<compile_context>
chip_gen: v7x
topology: tpu7x:2x2x1
jax: 0.10.0
libtpu: 0.0.40
codegen_flags: <defaults>
</compile_context>

<pallas_src>
import functools

import jax
import jax.numpy as jnp
from jax.experimental import pallas as pl
from jax.experimental.pallas import tpu as pltpu


def _round_up(x, m):
    return ((x + m - 1) // m) * m


# ---------------------------------------------------------------------------
# Pallas kernel: fused matmul + bias + (optional) ReLU.
# ---------------------------------------------------------------------------
def _fused_matmul_bias_act_kernel(x_ref, w_ref, b_ref, o_ref, *, relu):
    # x_ref: (tm, Kp) bf16, w_ref: (Kp, OCp) bf16, b_ref: (1, OCp) f32
    acc = jnp.dot(x_ref[...], w_ref[...], preferred_element_type=jnp.float32)
    y = acc + b_ref[...]
    if relu:
        y = jnp.maximum(y, 0.0)
    o_ref[...] = y.astype(o_ref.dtype)


def fused_matmul_bias_act(x2d, w2d, bias, *, relu, tm=256, out_dtype=jnp.float32):
    """y = act(x2d @ w2d + bias).  x2d: (M, K), w2d: (K, OC), bias: (OC,)."""
    M, K = x2d.shape
    K2, OC = w2d.shape
    assert K2 == K, (K2, K)

    # Lane-dense padding (zero padding is mathematically exact for the matmul).
    Kp = _round_up(K, 128)
    OCp = _round_up(OC, 128)
    tm = max(8, min(tm, _round_up(M, 8)))
    Mp = pl.cdiv(M, tm) * tm

    # bf16 operands for the MXU; accumulation stays f32 inside the kernel.
    xb = jnp.pad(x2d.astype(jnp.bfloat16), ((0, Mp - M), (0, Kp - K)))
    wb = jnp.pad(w2d.astype(jnp.bfloat16), ((0, Kp - K), (0, OCp - OC)))
    bb = jnp.pad(bias.reshape(1, OC).astype(jnp.float32), ((0, 0), (0, OCp - OC)))

    # Explicit VMEM budget: double-buffered blocks + headroom (clamped so it is
    # valid on v5e's 16 MiB default scope and v7x's 64 MiB physical VMEM).
    blk_bytes = (2 * (tm * Kp * 2) + 2 * (Kp * OCp * 2)
                 + 2 * (OCp * 4) + 2 * (tm * OCp * 4))
    vmem_limit = int(min(max(blk_bytes + (4 << 20), 16 << 20), 48 << 20))

    kernel = functools.partial(_fused_matmul_bias_act_kernel, relu=relu)
    out = pl.pallas_call(
        kernel,
        out_shape=jax.ShapeDtypeStruct((Mp, OCp), out_dtype),
        grid_spec=pltpu.PrefetchScalarGridSpec(
            num_scalar_prefetch=0,
            grid=(Mp // tm,),
            in_specs=[
                pl.BlockSpec((tm, Kp), lambda i: (i, 0)),
                pl.BlockSpec((Kp, OCp), lambda i: (0, 0)),   # weight resident
                pl.BlockSpec((1, OCp), lambda i: (0, 0)),    # bias resident
            ],
            out_specs=pl.BlockSpec((tm, OCp), lambda i: (i, 0)),
        ),
        compiler_params=pltpu.CompilerParams(
            dimension_semantics=("parallel",),
            vmem_limit_bytes=vmem_limit,
        ),
    )(xb, wb, bb)
    return out[:M, :OC]


# ---------------------------------------------------------------------------
# AlexConv: NHWC im2col (no transposes) + fused Pallas matmul/bias/ReLU.
# ---------------------------------------------------------------------------
def conv2d_bias_act(x_nhwc, weight, bias, *, stride, padding, relu=True, tm=256):
    N, H, W, C = x_nhwc.shape
    OC, Cw, KH, KW = weight.shape
    assert Cw == C
    sh, sw = stride
    ph, pw = padding
    OH = (H + 2 * ph - KH) // sh + 1
    OW = (W + 2 * pw - KW) // sw + 1

    xp = jnp.pad(x_nhwc, ((0, 0), (ph, ph), (pw, pw), (0, 0)))
    cols = [xp[:, kh:kh + (OH - 1) * sh + 1:sh, kw:kw + (OW - 1) * sw + 1:sw, :]
            for kh in range(KH) for kw in range(KW)]
    # (N, OH, OW, KH*KW*C) with (kh, kw, c) ordering -> (M, K)
    patches = jnp.concatenate(cols, axis=-1).reshape(N * OH * OW, KH * KW * C)
    # weight (OC, C, KH, KW) -> (KH, KW, C, OC) -> (K, OC) matches patch order.
    w2d = jnp.transpose(weight, (2, 3, 1, 0)).reshape(KH * KW * C, OC)

    out2d = fused_matmul_bias_act(patches, w2d, bias, relu=relu, tm=tm)
    return out2d.reshape(N, OH, OW, OC)


# ---------------------------------------------------------------------------
# Plain-JAX glue for ops without a good single-kernel Pallas win at this size.
# ---------------------------------------------------------------------------
def local_response_norm(x, channel_axis, size=5, alpha=1e-4, beta=0.75, k=2.0):
    # TODO(synk): LRN is done in plain JAX glue (matches F.local_response_norm).
    C = x.shape[channel_axis]
    pad = [(0, 0)] * x.ndim
    pad[channel_axis] = (size // 2, (size - 1) // 2)
    sqp = jnp.pad(x * x, pad)
    s = jnp.zeros_like(x)
    for i in range(size):
        s = s + jax.lax.slice_in_dim(sqp, i, i + C, axis=channel_axis)
    return x / jnp.power(k + (alpha / size) * s, beta)


def max_pool_ceil(x, spatial_axes, ksize=3, stride=2):
    # TODO(synk): ceil-mode MaxPool2d(3, 2) is done in plain JAX glue.
    pads = [(0, 0)] * x.ndim
    window = [1] * x.ndim
    strides = [1] * x.ndim
    for ax in spatial_axes:
        L = x.shape[ax]
        out = -(-(L - ksize) // stride) + 1      # ceil_mode output size
        need = (out - 1) * stride + ksize
        pads[ax] = (0, need - L)
        window[ax] = ksize
        strides[ax] = stride
    neg_inf = jnp.array(-jnp.inf, dtype=x.dtype)
    xp = jnp.pad(x, pads, constant_values=neg_inf)
    return jax.lax.reduce_window(xp, neg_inf, jax.lax.max,
                                 tuple(window), tuple(strides), "VALID")


# ---------------------------------------------------------------------------
# AlexNet forward (Pallas path) and pure-JAX f32 reference.
# ---------------------------------------------------------------------------
def alexnet_forward(x_nchw, params, *, stages, use_lrn):
    # NHWC end-to-end; single transpose in, single transpose out (to keep the
    # PyTorch NCHW .view(N, -1) flatten ordering for the classifier).
    x = jnp.transpose(x_nchw, (0, 2, 3, 1))
    for si, stage in enumerate(stages):
        lrn_stage = use_lrn and si in (0, 1)
        for ui, (_, k, s, p) in enumerate(stage):
            w, b = params["features"][si][ui]
            x = conv2d_bias_act(x, w, b, stride=(s, s), padding=(p, p), relu=True)
            if lrn_stage:
                x = local_response_norm(x, channel_axis=3)
        x = max_pool_ceil(x, spatial_axes=(1, 2))
    x = jnp.transpose(x, (0, 3, 1, 2))
    x = x.reshape(x.shape[0], -1)
    # AlexOutputBlock; Dropout is identity in inference mode.
    # TODO(synk): training-mode dropout not implemented.
    w1, b1 = params["fc1"]
    w2, b2 = params["fc2"]
    w3, b3 = params["fc3"]
    x = fused_matmul_bias_act(x, w1, b1, relu=True)
    x = fused_matmul_bias_act(x, w2, b2, relu=True)
    x = fused_matmul_bias_act(x, w3, b3, relu=False)
    return x


def reference_forward(x_nchw, params, *, stages, use_lrn):
    x = x_nchw
    for si, stage in enumerate(stages):
        lrn_stage = use_lrn and si in (0, 1)
        for ui, (_, k, s, p) in enumerate(stage):
            w, b = params["features"][si][ui]
            x = jax.lax.conv_general_dilated(
                x, w, window_strides=(s, s), padding=[(p, p), (p, p)],
                dimension_numbers=("NCHW", "OIHW", "NCHW"))
            x = jnp.maximum(x + b.reshape(1, -1, 1, 1), 0.0)
            if lrn_stage:
                x = local_response_norm(x, channel_axis=1)
        x = max_pool_ceil(x, spatial_axes=(2, 3))
    x = x.reshape(x.shape[0], -1)
    w1, b1 = params["fc1"]
    w2, b2 = params["fc2"]
    w3, b3 = params["fc3"]
    x = jnp.maximum(x @ w1 + b1, 0.0)
    x = jnp.maximum(x @ w2 + b2, 0.0)
    return x @ w3 + b3


if __name__ == "__main__":
    key = jax.random.PRNGKey(0)
    keys = iter(jax.random.split(key, 64))

    # Scaled-down AlexNet: same topology (3 stages, LRN on stages 1-2,
    # ceil-mode 3x3/2 max-pool after each stage, 3-layer classifier head).
    N, IN_C, IN_H, IN_W = 2, 3, 32, 32
    NUM_CLASSES = 10
    MID = 64                                           # scaled-down 4096
    stages = [
        [(8, 5, 2, 2)],                                # (out_ch, k, stride, pad)
        [(16, 3, 1, 1)],
        [(24, 3, 1, 1), (24, 3, 1, 1), (16, 3, 1, 1)],
    ]

    feat_params = []
    in_c = IN_C
    for stage in stages:
        sp = []
        for (oc, k, s, p) in stage:
            w = jax.random.normal(next(keys), (oc, in_c, k, k), jnp.float32)
            w = w * (2.0 / (in_c * k * k)) ** 0.5
            b = 0.05 * jax.random.normal(next(keys), (oc,), jnp.float32)
            sp.append((w, b))
            in_c = oc
        feat_params.append(sp)

    def spatial_out(h):
        for stage in stages:
            for (_, k, s, p) in stage:
                h = (h + 2 * p - k) // s + 1
            h = -(-(h - 3) // 2) + 1                   # ceil-mode 3x3/2 pool
        return h

    FH, FW = spatial_out(IN_H), spatial_out(IN_W)
    flat = in_c * FH * FW                              # analogue of C * 6 * 6

    def dense_params(fin, fout):
        w = jax.random.normal(next(keys), (fin, fout), jnp.float32) * (2.0 / fin) ** 0.5
        b = 0.05 * jax.random.normal(next(keys), (fout,), jnp.float32)
        return (w, b)

    params = {
        "features": feat_params,
        "fc1": dense_params(flat, MID),
        "fc2": dense_params(MID, MID),
        "fc3": dense_params(MID, NUM_CLASSES),
    }

    x = jax.random.normal(next(keys), (N, IN_C, IN_H, IN_W), dtype=jnp.float32)

    fwd = jax.jit(functools.partial(alexnet_forward, stages=stages, use_lrn=True))
    y = jax.block_until_ready(fwd(x, params))
    assert y.shape == (N, NUM_CLASSES), y.shape

    y_ref = reference_forward(x, params, stages=stages, use_lrn=True)
    err = float(jnp.max(jnp.abs(y - y_ref)))
    scale = float(jnp.maximum(1.0, jnp.max(jnp.abs(y_ref))))
    # bf16 matmul operands -> loosened tolerance (accumulation is f32).
    assert err <= 7.5e-2 * scale, (err, scale)

    print("KERNEL_OK")
</pallas_src>

<mosaic_0001>
module attributes {stable_mosaic.version = 11 : i64} {
  func.func @_fused_matmul_bias_act_kernel(%arg0: i32, %arg1: memref<256x128xbf16, #tpu.memory_space<vmem>>, %arg2: memref<128x128xbf16, #tpu.memory_space<vmem>>, %arg3: memref<1x128xf32, #tpu.memory_space<vmem>>, %arg4: memref<256x128xf32, #tpu.memory_space<vmem>>) attributes {dimension_semantics = [#tpu.dimension_semantics<parallel>], iteration_bounds = array<i64: 2>, scalar_prefetch = 0 : i64, scratch_operands = 0 : i64, tpu.core_type = #tpu.core_type<tc>, window_params = [{transform_indices = @transform_0, window_bounds = array<i64: 256, 128>}, {pipeline_mode = #tpu.pipeline_mode<synchronous>, transform_indices = @transform_1, window_bounds = array<i64: 128, 128>}, {pipeline_mode = #tpu.pipeline_mode<synchronous>, transform_indices = @transform_2, window_bounds = array<i64: 1, 128>}, {transform_indices = @transform_3, window_bounds = array<i64: 256, 128>}]} {
    %c0 = arith.constant 0 : index
    %c0_0 = arith.constant 0 : index
    %0 = vector.load %arg1[%c0, %c0_0] : memref<256x128xbf16, #tpu.memory_space<vmem>>, vector<256x128xbf16>
    %c0_1 = arith.constant 0 : index
    %c0_2 = arith.constant 0 : index
    %1 = vector.load %arg2[%c0_1, %c0_2] : memref<128x128xbf16, #tpu.memory_space<vmem>>, vector<128x128xbf16>
    %cst = arith.constant dense<0.000000e+00> : vector<256x128xf32>
    %2 = tpu.matmul %0, %1, %cst {dimension_numbers = #tpu.dot_dimension_numbers<[1], [0], [0], [1], [0, 0, 1, 1], [], []>} : vector<256x128xbf16>, vector<128x128xbf16>, vector<256x128xf32> -> vector<256x128xf32>
    %c0_3 = arith.constant 0 : index
    %c0_4 = arith.constant 0 : index
    %3 = vector.load %arg3[%c0_3, %c0_4] : memref<1x128xf32, #tpu.memory_space<vmem>>, vector<1x128xf32>
    %4 = vector.broadcast %3 : vector<1x128xf32> to vector<256x128xf32>
    %5 = arith.addf %2, %4 : vector<256x128xf32>
    %cst_5 = arith.constant 0.000000e+00 : f32
    %6 = vector.broadcast %cst_5 : f32 to vector<256x128xf32>
    %7 = arith.maximumf %5, %6 : vector<256x128xf32>
    %c0_6 = arith.constant 0 : index
    %c0_7 = arith.constant 0 : index
    %8 = vector.load %arg4[%c0_6, %c0_7] : memref<256x128xf32, #tpu.memory_space<vmem>>, vector<256x128xf32>
    tpu.vector_store %arg4[%c0_6, %c0_7], %7 {strides = array<i32>} : memref<256x128xf32, #tpu.memory_space<vmem>>, vector<256x128xf32>,
    return
  }
  func.func @transform_0(%arg0: i32) -> (i32, i32) {
    %c0_i32 = arith.constant 0 : i32
    %c0_i32_0 = arith.constant 0 : i32
    return %arg0, %c0_i32 : i32, i32
  }
  func.func @transform_1(%arg0: i32) -> (i32, i32) {
    %c0_i32 = arith.constant 0 : i32
    %c0_i32_0 = arith.constant 0 : i32
    %c0_i32_1 = arith.constant 0 : i32
    return %c0_i32, %c0_i32_0 : i32, i32
  }
  func.func @transform_2(%arg0: i32) -> (i32, i32) {
    %c0_i32 = arith.constant 0 : i32
    %c0_i32_0 = arith.constant 0 : i32
    %c0_i32_1 = arith.constant 0 : i32
    return %c0_i32, %c0_i32_0 : i32, i32
  }
  func.func @transform_3(%arg0: i32) -> (i32, i32) {
    %c0_i32 = arith.constant 0 : i32
    %c0_i32_0 = arith.constant 0 : i32
    return %arg0, %c0_i32 : i32, i32
  }
}

module attributes {stable_mosaic.version = 11 : i64} {
  func.func @_fused_matmul_bias_act_kernel(%arg0: i32, %arg1: memref<128x128xbf16, #tpu.memory_space<vmem>>, %arg2: memref<128x128xbf16, #tpu.memory_space<vmem>>, %arg3: memref<1x128xf32, #tpu.memory_space<vmem>>, %arg4: memref<128x128xf32, #tpu.memory_space<vmem>>) attributes {dimension_semantics = [#tpu.dimension_semantics<parallel>], iteration_bounds = array<i64: 1>, scalar_prefetch = 0 : i64, scratch_operands = 0 : i64, tpu.core_type = #tpu.core_type<tc>, window_params = [{transform_indices = @transform_0, window_bounds = array<i64: 128, 128>}, {pipeline_mode = #tpu.pipeline_mode<synchronous>, transform_indices = @transform_1, window_bounds = array<i64: 128, 128>}, {pipeline_mode = #tpu.pipeline_mode<synchronous>, transform_indices = @transform_2, window_bounds = array<i64: 1, 128>}, {transform_indices = @transform_3, window_bounds = array<i64: 128, 128>}]} {
    %c0 = arith.constant 0 : index
    %c0_0 = arith.constant 0 : index
    %0 = vector.load %arg1[%c0, %c0_0] : memref<128x128xbf16, #tpu.memory_space<vmem>>, vector<128x128xbf16>
    %c0_1 = arith.constant 0 : index
    %c0_2 = arith.constant 0 : index
    %1 = vector.load %arg2[%c0_1, %c0_2] : memref<128x128xbf16, #tpu.memory_space<vmem>>, vector<128x128xbf16>
    %cst = arith.constant dense<0.000000e+00> : vector<128x128xf32>
    %2 = tpu.matmul %0, %1, %cst {dimension_numbers = #tpu.dot_dimension_numbers<[1], [0], [0], [1], [0, 0, 1, 1], [], []>} : vector<128x128xbf16>, vector<128x128xbf16>, vector<128x128xf32> -> vector<128x128xf32>
    %c0_3 = arith.constant 0 : index
    %c0_4 = arith.constant 0 : index
    %3 = vector.load %arg3[%c0_3, %c0_4] : memref<1x128xf32, #tpu.memory_space<vmem>>, vector<1x128xf32>
    %4 = vector.broadcast %3 : vector<1x128xf32> to vector<128x128xf32>
    %5 = arith.addf %2, %4 : vector<128x128xf32>
    %cst_5 = arith.constant 0.000000e+00 : f32
    %6 = vector.broadcast %cst_5 : f32 to vector<128x128xf32>
    %7 = arith.maximumf %5, %6 : vector<128x128xf32>
    %c0_6 = arith.constant 0 : index
    %c0_7 = arith.constant 0 : index
    %8 = vector.load %arg4[%c0_6, %c0_7] : memref<128x128xf32, #tpu.memory_space<vmem>>, vector<128x128xf32>
    tpu.vector_store %arg4[%c0_6, %c0_7], %7 {strides = array<i32>} : memref<128x128xf32, #tpu.memory_space<vmem>>, vector<128x128xf32>,
    return
  }
  func.func @transform_0(%arg0: i32) -> (i32, i32) {
    %c0_i32 = arith.constant 0 : i32
    %c0_i32_0 = arith.constant 0 : i32
    return %arg0, %c0_i32 : i32, i32
  }
  func.func @transform_1(%arg0: i32) -> (i32, i32) {
    %c0_i32 = arith.constant 0 : i32
    %c0_i32_0 = arith.constant 0 : i32
    %c0_i32_1 = arith.constant 0 : i32
    return %c0_i32, %c0_i32_0 : i32, i32
  }
  func.func @transform_2(%arg0: i32) -> (i32, i32) {
    %c0_i32 = arith.constant 0 : i32
    %c0_i32_0 = arith.constant 0 : i32
    %c0_i32_1 = arith.constant 0 : i32
    return %c0_i32, %c0_i32_0 : i32, i32
  }
  func.func @transform_3(%arg0: i32) -> (i32, i32) {
    %c0_i32 = arith.constant 0 : i32
    %c0_i32_0 = arith.constant 0 : i32
    return %arg0, %c0_i32 : i32, i32
  }
}

module attributes {stable_mosaic.version = 11 : i64} {
  func.func @_fused_matmul_bias_act_kernel(%arg0: i32, %arg1: memref<32x256xbf16, #tpu.memory_space<vmem>>, %arg2: memref<256x128xbf16, #tpu.memory_space<vmem>>, %arg3: memref<1x128xf32, #tpu.memory_space<vmem>>, %arg4: memref<32x128xf32, #tpu.memory_space<vmem>>) attributes {dimension_semantics = [#tpu.dimension_semantics<parallel>], iteration_bounds = array<i64: 1>, scalar_prefetch = 0 : i64, scratch_operands = 0 : i64, tpu.core_type = #tpu.core_type<tc>, window_params = [{transform_indices = @transform_0, window_bounds = array<i64: 32, 256>}, {pipeline_mode = #tpu.pipeline_mode<synchronous>, transform_indices = @transform_1, window_bounds = array<i64: 256, 128>}, {pipeline_mode = #tpu.pipeline_mode<synchronous>, transform_indices = @transform_2, window_bounds = array<i64: 1, 128>}, {transform_indices = @transform_3, window_bounds = array<i64: 32, 128>}]} {
    %c0 = arith.constant 0 : index
    %c0_0 = arith.constant 0 : index
    %0 = vector.load %arg1[%c0, %c0_0] : memref<32x256xbf16, #tpu.memory_space<vmem>>, vector<32x256xbf16>
    %c0_1 = arith.constant 0 : index
    %c0_2 = arith.constant 0 : index
    %1 = vector.load %arg2[%c0_1, %c0_2] : memref<256x128xbf16, #tpu.memory_space<vmem>>, vector<256x128xbf16>
    %cst = arith.constant dense<0.000000e+00> : vector<32x128xf32>
    %2 = tpu.matmul %0, %1, %cst {dimension_numbers = #tpu.dot_dimension_numbers<[1], [0], [0], [1], [0, 0, 1, 1], [], []>} : vector<32x256xbf16>, vector<256x128xbf16>, vector<32x128xf32> -> vector<32x128xf32>
    %c0_3 = arith.constant 0 : index
    %c0_4 = arith.constant 0 : index
    %3 = vector.load %arg3[%c0_3, %c0_4] : memref<1x128xf32, #tpu.memory_space<vmem>>, vector<1x128xf32>
    %4 = vector.broadcast %3 : vector<1x128xf32> to vector<32x128xf32>
    %5 = arith.addf %2, %4 : vector<32x128xf32>
    %cst_5 = arith.constant 0.000000e+00 : f32
    %6 = vector.broadcast %cst_5 : f32 to vector<32x128xf32>
    %7 = arith.maximumf %5, %6 : vector<32x128xf32>
    %c0_6 = arith.constant 0 : index
    %c0_7 = arith.constant 0 : index
    %8 = vector.load %arg4[%c0_6, %c0_7] : memref<32x128xf32, #tpu.memory_space<vmem>>, vector<32x128xf32>
    tpu.vector_store %arg4[%c0_6, %c0_7], %7 {strides = array<i32>} : memref<32x128xf32, #tpu.memory_space<vmem>>, vector<32x128xf32>,
    return
  }
  func.func @transform_0(%arg0: i32) -> (i32, i32) {
    %c0_i32 = arith.constant 0 : i32
    %c0_i32_0 = arith.constant 0 : i32
    return %arg0, %c0_i32 : i32, i32
  }
  func.func @transform_1(%arg0: i32) -> (i32, i32) {
    %c0_i32 = arith.constant 0 : i32
    %c0_i32_0 = arith.constant 0 : i32
    %c0_i32_1 = arith.constant 0 : i32
    return %c0_i32, %c0_i32_0 : i32, i32
  }
  func.func @transform_2(%arg0: i32) -> (i32, i32) {
    %c0_i32 = arith.constant 0 : i32
    %c0_i32_0 = arith.constant 0 : i32
    %c0_i32_1 = arith.constant 0 : i32
    return %c0_i32, %c0_i32_0 : i32, i32
  }
  func.func @transform_3(%arg0: i32) -> (i32, i32) {
    %c0_i32 = arith.constant 0 : i32
    %c0_i32_0 = arith.constant 0 : i32
    return %arg0, %c0_i32 : i32, i32
  }
}

module attributes {stable_mosaic.version = 11 : i64} {
  func.func @_fused_matmul_bias_act_kernel(%arg0: i32, %arg1: memref<8x128xbf16, #tpu.memory_space<vmem>>, %arg2: memref<128x128xbf16, #tpu.memory_space<vmem>>, %arg3: memref<1x128xf32, #tpu.memory_space<vmem>>, %arg4: memref<8x128xf32, #tpu.memory_space<vmem>>) attributes {dimension_semantics = [#tpu.dimension_semantics<parallel>], iteration_bounds = array<i64: 1>, scalar_prefetch = 0 : i64, scratch_operands = 0 : i64, tpu.core_type = #tpu.core_type<tc>, window_params = [{transform_indices = @transform_0, window_bounds = array<i64: 8, 128>}, {pipeline_mode = #tpu.pipeline_mode<synchronous>, transform_indices = @transform_1, window_bounds = array<i64: 128, 128>}, {pipeline_mode = #tpu.pipeline_mode<synchronous>, transform_indices = @transform_2, window_bounds = array<i64: 1, 128>}, {transform_indices = @transform_3, window_bounds = array<i64: 8, 128>}]} {
    %c0 = arith.constant 0 : index
    %c0_0 = arith.constant 0 : index
    %0 = vector.load %arg1[%c0, %c0_0] : memref<8x128xbf16, #tpu.memory_space<vmem>>, vector<8x128xbf16>
    %c0_1 = arith.constant 0 : index
    %c0_2 = arith.constant 0 : index
    %1 = vector.load %arg2[%c0_1, %c0_2] : memref<128x128xbf16, #tpu.memory_space<vmem>>, vector<128x128xbf16>
    %cst = arith.constant dense<0.000000e+00> : vector<8x128xf32>
    %2 = tpu.matmul %0, %1, %cst {dimension_numbers = #tpu.dot_dimension_numbers<[1], [0], [0], [1], [0, 0, 1, 1], [], []>} : vector<8x128xbf16>, vector<128x128xbf16>, vector<8x128xf32> -> vector<8x128xf32>
    %c0_3 = arith.constant 0 : index
    %c0_4 = arith.constant 0 : index
    %3 = vector.load %arg3[%c0_3, %c0_4] : memref<1x128xf32, #tpu.memory_space<vmem>>, vector<1x128xf32>
    %4 = vector.broadcast %3 : vector<1x128xf32> to vector<8x128xf32>
    %5 = arith.addf %2, %4 : vector<8x128xf32>
    %cst_5 = arith.constant 0.000000e+00 : f32
    %6 = vector.broadcast %cst_5 : f32 to vector<8x128xf32>
    %7 = arith.maximumf %5, %6 : vector<8x128xf32>
    %c0_6 = arith.constant 0 : index
    %c0_7 = arith.constant 0 : index
    %8 = vector.load %arg4[%c0_6, %c0_7] : memref<8x128xf32, #tpu.memory_space<vmem>>, vector<8x128xf32>
    tpu.vector_store %arg4[%c0_6, %c0_7], %7 {strides = array<i32>} : memref<8x128xf32, #tpu.memory_space<vmem>>, vector<8x128xf32>,
    return
  }
  func.func @transform_0(%arg0: i32) -> (i32, i32) {
    %c0_i32 = arith.constant 0 : i32
    %c0_i32_0 = arith.constant 0 : i32
    return %arg0, %c0_i32 : i32, i32
  }
  func.func @transform_1(%arg0: i32) -> (i32, i32) {
    %c0_i32 = arith.constant 0 : i32
    %c0_i32_0 = arith.constant 0 : i32
    %c0_i32_1 = arith.constant 0 : i32
    return %c0_i32, %c0_i32_0 : i32, i32
  }
  func.func @transform_2(%arg0: i32) -> (i32, i32) {
    %c0_i32 = arith.constant 0 : i32
    %c0_i32_0 = arith.constant 0 : i32
    %c0_i32_1 = arith.constant 0 : i32
    return %c0_i32, %c0_i32_0 : i32, i32
  }
  func.func @transform_3(%arg0: i32) -> (i32, i32) {
    %c0_i32 = arith.constant 0 : i32
    %c0_i32_0 = arith.constant 0 : i32
    return %arg0, %c0_i32 : i32, i32
  }
}

module attributes {stable_mosaic.version = 11 : i64} {
  func.func @_fused_matmul_bias_act_kernel(%arg0: i32, %arg1: memref<8x128xbf16, #tpu.memory_space<vmem>>, %arg2: memref<128x128xbf16, #tpu.memory_space<vmem>>, %arg3: memref<1x128xf32, #tpu.memory_space<vmem>>, %arg4: memref<8x128xf32, #tpu.memory_space<vmem>>) attributes {dimension_semantics = [#tpu.dimension_semantics<parallel>], iteration_bounds = array<i64: 1>, scalar_prefetch = 0 : i64, scratch_operands = 0 : i64, tpu.core_type = #tpu.core_type<tc>, window_params = [{transform_indices = @transform_0, window_bounds = array<i64: 8, 128>}, {pipeline_mode = #tpu.pipeline_mode<synchronous>, transform_indices = @transform_1, window_bounds = array<i64: 128, 128>}, {pipeline_mode = #tpu.pipeline_mode<synchronous>, transform_indices = @transform_2, window_bounds = array<i64: 1, 128>}, {transform_indices = @transform_3, window_bounds = array<i64: 8, 128>}]} {
    %c0 = arith.constant 0 : index
    %c0_0 = arith.constant 0 : index
    %0 = vector.load %arg1[%c0, %c0_0] : memref<8x128xbf16, #tpu.memory_space<vmem>>, vector<8x128xbf16>
    %c0_1 = arith.constant 0 : index
    %c0_2 = arith.constant 0 : index
    %1 = vector.load %arg2[%c0_1, %c0_2] : memref<128x128xbf16, #tpu.memory_space<vmem>>, vector<128x128xbf16>
    %cst = arith.constant dense<0.000000e+00> : vector<8x128xf32>
    %2 = tpu.matmul %0, %1, %cst {dimension_numbers = #tpu.dot_dimension_numbers<[1], [0], [0], [1], [0, 0, 1, 1], [], []>} : vector<8x128xbf16>, vector<128x128xbf16>, vector<8x128xf32> -> vector<8x128xf32>
    %c0_3 = arith.constant 0 : index
    %c0_4 = arith.constant 0 : index
    %3 = vector.load %arg3[%c0_3, %c0_4] : memref<1x128xf32, #tpu.memory_space<vmem>>, vector<1x128xf32>
    %4 = vector.broadcast %3 : vector<1x128xf32> to vector<8x128xf32>
    %5 = arith.addf %2, %4 : vector<8x128xf32>
    %c0_5 = arith.constant 0 : index
    %c0_6 = arith.constant 0 : index
    %6 = vector.load %arg4[%c0_5, %c0_6] : memref<8x128xf32, #tpu.memory_space<vmem>>, vector<8x128xf32>
    tpu.vector_store %arg4[%c0_5, %c0_6], %5 {strides = array<i32>} : memref<8x128xf32, #tpu.memory_space<vmem>>, vector<8x128xf32>,
    return
  }
  func.func @transform_0(%arg0: i32) -> (i32, i32) {
    %c0_i32 = arith.constant 0 : i32
    %c0_i32_0 = arith.constant 0 : i32
    return %arg0, %c0_i32 : i32, i32
  }
  func.func @transform_1(%arg0: i32) -> (i32, i32) {
    %c0_i32 = arith.constant 0 : i32
    %c0_i32_0 = arith.constant 0 : i32
    %c0_i32_1 = arith.constant 0 : i32
    return %c0_i32, %c0_i32_0 : i32, i32
  }
  func.func @transform_2(%arg0: i32) -> (i32, i32) {
    %c0_i32 = arith.constant 0 : i32
    %c0_i32_0 = arith.constant 0 : i32
    %c0_i32_1 = arith.constant 0 : i32
    return %c0_i32, %c0_i32_0 : i32, i32
  }
  func.func @transform_3(%arg0: i32) -> (i32, i32) {
    %c0_i32 = arith.constant 0 : i32
    %c0_i32_0 = arith.constant 0 : i32
    return %arg0, %c0_i32 : i32, i32
  }
}

</mosaic_0001>

<llo_original>
// kernel: mul.8
$region0: #{mul.8}
  #allocation0 [shape = 's32[1]{0}', space=sflag, size = 0x4, scoped, tag = 'scoped memory for mul.8']
  %s0 = inlined_call_operand.vmem [shape: f32[2,16,16,8], index: 0, kind: input, shape index: {}, may-alias: {0,1}]
  %s1 = inlined_call_operand.vmem [shape: f32[2,16,16,8], index: 1, kind: input, shape index: {}, may-alias: {0,1}]
  %s2 = inlined_call_operand.vmem [shape: f32[2,16,16,8], index: 2, kind: output, shape index: {}]
  %v3 = vld [vmem:[%s0] sm:$0xff]
  %v4 = vld [vmem:[%s1] sm:$0xff]
  %5 = xla_tuple %v3, %v4
  %6 = xla_tuple %5
  %v7 = vmul.f32 %v3, %v4
  %8 = xla_tuple %v7
  %9 = vst [vmem:[%s2] sm:$0xff] %v7
  %s10 = scalar_lea.vmem %s0, 256
  %v11 = vld [vmem:[%s10] sm:$0xff]
  %s12 = scalar_lea.vmem %s1, 256
  %v13 = vld [vmem:[%s12] sm:$0xff]
  %14 = xla_tuple %v11, %v13
  %15 = xla_tuple %14
  %v16 = vmul.f32 %v11, %v13
  %17 = xla_tuple %v16
  %s18 = scalar_lea.vmem %s2, 256
  %19 = vst [vmem:[%s18] sm:$0xff] %v16
  %s20 = scalar_lea.vmem %s0, 16
  %v21 = vld [vmem:[%s20] sm:$0xff]
  %s22 = scalar_lea.vmem %s1, 16
  %v23 = vld [vmem:[%s22] sm:$0xff]
  %24 = xla_tuple %v21, %v23
  %25 = xla_tuple %24
  %v26 = vmul.f32 %v21, %v23
  %27 = xla_tuple %v26
  %s28 = scalar_lea.vmem %s2, 16
  %29 = vst [vmem:[%s28] sm:$0xff] %v26
  %s30 = scalar_lea.vmem %s0, 272
  %v31 = vld [vmem:[%s30] sm:$0xff]
  %s32 = scalar_lea.vmem %s1, 272
  %v33 = vld [vmem:[%s32] sm:$0xff]
  %34 = xla_tuple %v31, %v33
  %35 = xla_tuple %34
  %v36 = vmul.f32 %v31, %v33
  %37 = xla_tuple %v36
  %s38 = scalar_lea.vmem %s2, 272
  %39 = vst [vmem:[%s38] sm:$0xff] %v36
  %s40 = scalar_lea.vmem %s0, 32
  %v41 = vld [vmem:[%s40] sm:$0xff]
  %s42 = scalar_lea.vmem %s1, 32
  %v43 = vld [vmem:[%s42] sm:$0xff]
  %44 = xla_tuple %v41, %v43
  %45 = xla_tuple %44
  %v46 = vmul.f32 %v41, %v43
  %47 = xla_tuple %v46
  %s48 = scalar_lea.vmem %s2, 32
  %49 = vst [vmem:[%s48] sm:$0xff] %v46
  %s50 = scalar_lea.vmem %s0, 288
  %v51 = vld [vmem:[%s50] sm:$0xff]
  %s52 = scalar_lea.vmem %s1, 288
  %v53 = vld [vmem:[%s52] sm:$0xff]
  %54 = xla_tuple %v51, %v53
  %55 = xla_tuple %54
  %v56 = vmul.f32 %v51, %v53
  %57 = xla_tuple %v56
  %s58 = scalar_lea.vmem %s2, 288
  %59 = vst [vmem:[%s58] sm:$0xff] %v56
  %s60 = scalar_lea.vmem %s0, 48
  %v61 = vld [vmem:[%s60] sm:$0xff]
  %s62 = scalar_lea.vmem %s1, 48
  %v63 = vld [vmem:[%s62] sm:$0xff]
  %64 = xla_tuple %v61, %v63
  %65 = xla_tuple %64
  %v66 = vmul.f32 %v61, %v63
  %67 = xla_tuple %v66
  %s68 = scalar_lea.vmem %s2, 48
  %69 = vst [vmem:[%s68] sm:$0xff] %v66
  %s70 = scalar_lea.vmem %s0, 304
  %v71 = vld [vmem:[%s70] sm:$0xff]
  %s72 = scalar_lea.vmem %s1, 304
  %v73 = vld [vmem:[%s72] sm:$0xff]
  %74 = xla_tuple %v71, %v73
  %75 = xla_tuple %74
  %v76 = vmul.f32 %v71, %v73
  %77 = xla_tuple %v76
  %s78 = scalar_lea.vmem %s2, 304
  %79 = vst [vmem:[%s78] sm:$0xff] %v76
  %s80 = scalar_lea.vmem %s0, 64
  %v81 = vld [vmem:[%s80] sm:$0xff]
  %s82 = scalar_lea.vmem %s1, 64
  %v83 = vld [vmem:[%s82] sm:$0xff]
  %84 = xla_tuple %v81, %v83
  %85 = xla_tuple %84
  %v86 = vmul.f32 %v81, %v83
  %87 = xla_tuple %v86
  %s88 = scalar_lea.vmem %s2, 64
  %89 = vst [vmem:[%s88] sm:$0xff] %v86
  %s90 = scalar_lea.vmem %s0, 320
  %v91 = vld [vmem:[%s90] sm:$0xff]
  %s92 = scalar_lea.vmem %s1, 320
  %v93 = vld [vmem:[%s92] sm:$0xff]
  %94 = xla_tuple %v91, %v93
  %95 = xla_tuple %94
  %v96 = vmul.f32 %v91, %v93
  %97 = xla_tuple %v96
  %s98 = scalar_lea.vmem %s2, 320
  %99 = vst [vmem:[%s98] sm:$0xff] %v96
  %s100 = scalar_lea.vmem %s0, 80
  %v101 = vld [vmem:[%s100] sm:$0xff]
  %s102 = scalar_lea.vmem %s1, 80
  %v103 = vld [vmem:[%s102] sm:$0xff]
  %104 = xla_tuple %v101, %v103
  %105 = xla_tuple %104
  %v106 = vmul.f32 %v101, %v103
  %107 = xla_tuple %v106
  %s108 = scalar_lea.vmem %s2, 80
  %109 = vst [vmem:[%s108] sm:$0xff] %v106
  %s110 = scalar_lea.vmem %s0, 336
  %v111 = vld [vmem:[%s110] sm:$0xff]
  %s112 = scalar_lea.vmem %s1, 336
  %v113 = vld [vmem:[%s112] sm:$0xff]
  %114 = xla_tuple %v111, %v113
  %115 = xla_tuple %114
  %v116 = vmul.f32 %v111, %v113
  %117 = xla_tuple %v116
  %s118 = scalar_lea.vmem %s2, 336
  %119 = vst [vmem:[%s118] sm:$0xff] %v116
  %s120 = scalar_lea.vmem %s0, 96
  %v121 = vld [vmem:[%s120] sm:$0xff]
  %s122 = scalar_lea.vmem %s1, 96
  %v123 = vld [vmem:[%s122] sm:$0xff]
  %124 = xla_tuple %v121, %v123
  %125 = xla_tuple %124
  %v126 = vmul.f32 %v121, %v123
  %127 = xla_tuple %v126
  %s128 = scalar_lea.vmem %s2, 96
  %129 = vst [vmem:[%s128] sm:$0xff] %v126
  %s130 = scalar_lea.vmem %s0, 352
  %v131 = vld [vmem:[%s130] sm:$0xff]
  %s132 = scalar_lea.vmem %s1, 352
  %v133 = vld [vmem:[%s132] sm:$0xff]
  %134 = xla_tuple %v131, %v133
  %135 = xla_tuple %134
  %v136 = vmul.f32 %v131, %v133
  %137 = xla_tuple %v136
  %s138 = scalar_lea.vmem %s2, 352
  %139 = vst [vmem:[%s138] sm:$0xff] %v136
  %s140 = scalar_lea.vmem %s0, 112
  %v141 = vld [vmem:[%s140] sm:$0xff]
  %s142 = scalar_lea.vmem %s1, 112
  %v143 = vld [vmem:[%s142] sm:$0xff]
  %144 = xla_tuple %v141, %v143
  %145 = xla_tuple %144
  %v146 = vmul.f32 %v141, %v143
  %147 = xla_tuple %v146
  %s148 = scalar_lea.vmem %s2, 112
  %149 = vst [vmem:[%s148] sm:$0xff] %v146
  %s150 = scalar_lea.vmem %s0, 368
  %v151 = vld [vmem:[%s150] sm:$0xff]
  %s152 = scalar_lea.vmem %s1, 368
  %v153 = vld [vmem:[%s152] sm:$0xff]
  %154 = xla_tuple %v151, %v153
  %155 = xla_tuple %154
  %v156 = vmul.f32 %v151, %v153
  %157 = xla_tuple %v156
  %s158 = scalar_lea.vmem %s2, 368
  %159 = vst [vmem:[%s158] sm:$0xff] %v156
  %s160 = scalar_lea.vmem %s0, 128
  %v161 = vld [vmem:[%s160] sm:$0xff]
  %s162 = scalar_lea.vmem %s1, 128
  %v163 = vld [vmem:[%s162] sm:$0xff]
  %164 = xla_tuple %v161, %v163
  %165 = xla_tuple %164
  %v166 = vmul.f32 %v161, %v163
  %167 = xla_tuple %v166
  %s168 = scalar_lea.vmem %s2, 128
  %169 = vst [vmem:[%s168] sm:$0xff] %v166
  %s170 = scalar_lea.vmem %s0, 384
  %v171 = vld [vmem:[%s170] sm:$0xff]
  %s172 = scalar_lea.vmem %s1, 384
  %v173 = vld [vmem:[%s172] sm:$0xff]
  %174 = xla_tuple %v171, %v173
  %175 = xla_tuple %174
  %v176 = vmul.f32 %v171, %v173
  %177 = xla_tuple %v176
  %s178 = scalar_lea.vmem %s2, 384
  %179 = vst [vmem:[%s178] sm:$0xff] %v176
  %s180 = scalar_lea.vmem %s0, 144
  %v181 = vld [vmem:[%s180] sm:$0xff]
  %s182 = scalar_lea.vmem %s1, 144
  %v183 = vld [vmem:[%s182] sm:$0xff]
  %184 = xla_tuple %v181, %v183
  %185 = xla_tuple %184
  %v186 = vmul.f32 %v181, %v183
  %187 = xla_tuple %v186
  %s188 = scalar_lea.vmem %s2, 144
  %189 = vst [vmem:[%s188] sm:$0xff] %v186
  %s190 = scalar_lea.vmem %s0, 400
  %v191 = vld [vmem:[%s190] sm:$0xff]
  %s192 = scalar_lea.vmem %s1, 400
  %v193 = vld [vmem:[%s192] sm:$0xff]
  %194 = xla_tuple %v191, %v193
  %195 = xla_tuple %194
  %v196 = vmul.f32 %v191, %v193
  %197 = xla_tuple %v196
  %s198 = scalar_lea.vmem %s2, 400
  %199 = vst [vmem:[%s198] sm:$0xff] %v196
  %s200 = scalar_lea.vmem %s0, 160
  %v201 = vld [vmem:[%s200] sm:$0xff]
  %s202 = scalar_lea.vmem %s1, 160
  %v203 = vld [vmem:[%s202] sm:$0xff]
  %204 = xla_tuple %v201, %v203
  %205 = xla_tuple %204
  %v206 = vmul.f32 %v201, %v203
  %207 = xla_tuple %v206
  %s208 = scalar_lea.vmem %s2, 160
  %209 = vst [vmem:[%s208] sm:$0xff] %v206
  %s210 = scalar_lea.vmem %s0, 416
  %v211 = vld [vmem:[%s210] sm:$0xff]
  %s212 = scalar_lea.vmem %s1, 416
  %v213 = vld [vmem:[%s212] sm:$0xff]
  %214 = xla_tuple %v211, %v213
  %215 = xla_tuple %214
  %v216 = vmul.f32 %v211, %v213
  %217 = xla_tuple %v216
  %s218 = scalar_lea.vmem %s2, 416
  %219 = vst [vmem:[%s218] sm:$0xff] %v216
  %s220 = scalar_lea.vmem %s0, 176
  %v221 = vld [vmem:[%s220] sm:$0xff]
  %s222 = scalar_lea.vmem %s1, 176
  %v223 = vld [vmem:[%s222] sm:$0xff]
  %224 = xla_tuple %v221, %v223
  %225 = xla_tuple %224
  %v226 = vmul.f32 %v221, %v223
  %227 = xla_tuple %v226
  %s228 = scalar_lea.vmem %s2, 176
  %229 = vst [vmem:[%s228] sm:$0xff] %v226
  %s230 = scalar_lea.vmem %s0, 432
  %v231 = vld [vmem:[%s230] sm:$0xff]
  %s232 = scalar_lea.vmem %s1, 432
  %v233 = vld [vmem:[%s232] sm:$0xff]
  %234 = xla_tuple %v231, %v233
  %235 = xla_tuple %234
  %v236 = vmul.f32 %v231, %v233
  %237 = xla_tuple %v236
  %s238 = scalar_lea.vmem %s2, 432
  %239 = vst [vmem:[%s238] sm:$0xff] %v236
  %s240 = scalar_lea.vmem %s0, 192
  %v241 = vld [vmem:[%s240] sm:$0xff]
  %s242 = scalar_lea.vmem %s1, 192
  %v243 = vld [vmem:[%s242] sm:$0xff]
  %244 = xla_tuple %v241, %v243
  %245 = xla_tuple %244
  %v246 = vmul.f32 %v241, %v243
  %247 = xla_tuple %v246
  %s248 = scalar_lea.vmem %s2, 192
  %249 = vst [vmem:[%s248] sm:$0xff] %v246
  %s250 = scalar_lea.vmem %s0, 448
  %v251 = vld [vmem:[%s250] sm:$0xff]
  %s252 = scalar_lea.vmem %s1, 448
  %v253 = vld [vmem:[%s252] sm:$0xff]
  %254 = xla_tuple %v251, %v253
  %255 = xla_tuple %254
  %v256 = vmul.f32 %v251, %v253
  %257 = xla_tuple %v256
  %s258 = scalar_lea.vmem %s2, 448
  %259 = vst [vmem:[%s258] sm:$0xff] %v256
  %s260 = scalar_lea.vmem %s0, 208
  %v261 = vld [vmem:[%s260] sm:$0xff]
  %s262 = scalar_lea.vmem %s1, 208
  %v263 = vld [vmem:[%s262] sm:$0xff]
  %264 = xla_tuple %v261, %v263
  %265 = xla_tuple %264
  %v266 = vmul.f32 %v261, %v263
  %267 = xla_tuple %v266
  %s268 = scalar_lea.vmem %s2, 208
  %269 = vst [vmem:[%s268] sm:$0xff] %v266
  %s270 = scalar_lea.vmem %s0, 464
  %v271 = vld [vmem:[%s270] sm:$0xff]
  %s272 = scalar_lea.vmem %s1, 464
  %v273 = vld [vmem:[%s272] sm:$0xff]
  %274 = xla_tuple %v271, %v273
  %275 = xla_tuple %274
  %v276 = vmul.f32 %v271, %v273
  %277 = xla_tuple %v276
  %s278 = scalar_lea.vmem %s2, 464
  %279 = vst [vmem:[%s278] sm:$0xff] %v276
  %s280 = scalar_lea.vmem %s0, 224
  %v281 = vld [vmem:[%s280] sm:$0xff]
  %s282 = scalar_lea.vmem %s1, 224
  %v283 = vld [vmem:[%s282] sm:$0xff]
  %284 = xla_tuple %v281, %v283
  %285 = xla_tuple %284
  %v286 = vmul.f32 %v281, %v283
  %287 = xla_tuple %v286
  %s288 = scalar_lea.vmem %s2, 224
  %289 = vst [vmem:[%s288] sm:$0xff] %v286
  %s290 = scalar_lea.vmem %s0, 480
  %v291 = vld [vmem:[%s290] sm:$0xff]
  %s292 = scalar_lea.vmem %s1, 480
  %v293 = vld [vmem:[%s292] sm:$0xff]
  %294 = xla_tuple %v291, %v293
  %295 = xla_tuple %294
  %v296 = vmul.f32 %v291, %v293
  %297 = xla_tuple %v296
  %s298 = scalar_lea.vmem %s2, 480
  %299 = vst [vmem:[%s298] sm:$0xff] %v296
  %s300 = scalar_lea.vmem %s0, 240
  %v301 = vld [vmem:[%s300] sm:$0xff]
  %s302 = scalar_lea.vmem %s1, 240
  %v303 = vld [vmem:[%s302] sm:$0xff]
  %304 = xla_tuple %v301, %v303
  %305 = xla_tuple %304
  %v306 = vmul.f32 %v301, %v303
  %307 = xla_tuple %v306
  %s308 = scalar_lea.vmem %s2, 240
  %309 = vst [vmem:[%s308] sm:$0xff] %v306
  %s310 = scalar_lea.vmem %s0, 496
  %v311 = vld [vmem:[%s310] sm:$0xff]
  %s312 = scalar_lea.vmem %s1, 496
  %v313 = vld [vmem:[%s312] sm:$0xff]
  %314 = xla_tuple %v311, %v313
  %315 = xla_tuple %314
  %v316 = vmul.f32 %v311, %v313
  %317 = xla_tuple %v316
  %s318 = scalar_lea.vmem %s2, 496
  %319 = vst [vmem:[%s318] sm:$0xff] %v316
  %s320 = scalar_lea.vmem %s0, 8
  %v321 = vld [vmem:[%s320] sm:$0xff]
  %s322 = scalar_lea.vmem %s1, 8
  %v323 = vld [vmem:[%s322] sm:$0xff]
  %324 = xla_tuple %v321, %v323
  %325 = xla_tuple %324
  %v326 = vmul.f32 %v321, %v323
  %327 = xla_tuple %v326
  %s328 = scalar_lea.vmem %s2, 8
  %329 = vst [vmem:[%s328] sm:$0xff] %v326
  %s330 = scalar_lea.vmem %s0, 264
  %v331 = vld [vmem:[%s330] sm:$0xff]
  %s332 = scalar_lea.vmem %s1, 264
  %v333 = vld [vmem:[%s332] sm:$0xff]
  %334 = xla_tuple %v331, %v333
  %335 = xla_tuple %334
  %v336 = vmul.f32 %v331, %v333
  %337 = xla_tuple %v336
  %s338 = scalar_lea.vmem %s2, 264
  %339 = vst [vmem:[%s338] sm:$0xff] %v336
  %s340 = scalar_lea.vmem %s0, 24
  %v341 = vld [vmem:[%s340] sm:$0xff]
  %s342 = scalar_lea.vmem %s1, 24
  %v343 = vld [vmem:[%s342] sm:$0xff]
  %344 = xla_tuple %v341, %v343
  %345 = xla_tuple %344
  %v346 = vmul.f32 %v341, %v343
  %347 = xla_tuple %v346
  %s348 = scalar_lea.vmem %s2, 24
  %349 = vst [vmem:[%s348] sm:$0xff] %v346
  %s350 = scalar_lea.vmem %s0, 280
  %v351 = vld [vmem:[%s350] sm:$0xff]
  %s352 = scalar_lea.vmem %s1, 280
  %v353 = vld [vmem:[%s352] sm:$0xff]
  %354 = xla_tuple %v351, %v353
  %355 = xla_tuple %354
  %v356 = vmul.f32 %v351, %v353
  %357 = xla_tuple %v356
  %s358 = scalar_lea.vmem %s2, 280
  %359 = vst [vmem:[%s358] sm:$0xff] %v356
  %s360 = scalar_lea.vmem %s0, 40
  %v361 = vld [vmem:[%s360] sm:$0xff]
  %s362 = scalar_lea.vmem %s1, 40
  %v363 = vld [vmem:[%s362] sm:$0xff]
  %364 = xla_tuple %v361, %v363
  %365 = xla_tuple %364
  %v366 = vmul.f32 %v361, %v363
  %367 = xla_tuple %v366
  %s368 = scalar_lea.vmem %s2, 40
  %369 = vst [vmem:[%s368] sm:$0xff] %v366
  %s370 = scalar_lea.vmem %s0, 296
  %v371 = vld [vmem:[%s370] sm:$0xff]
  %s372 = scalar_lea.vmem %s1, 296
  %v373 = vld [vmem:[%s372] sm:$0xff]
  %374 = xla_tuple %v371, %v373
  %375 = xla_tuple %374
  %v376 = vmul.f32 %v371, %v373
  %377 = xla_tuple %v376
  %s378 = scalar_lea.vmem %s2, 296
  %379 = vst [vmem:[%s378] sm:$0xff] %v376
  %s380 = scalar_lea.vmem %s0, 56
  %v381 = vld [vmem:[%s380] sm:$0xff]
  %s382 = scalar_lea.vmem %s1, 56
  %v383 = vld [vmem:[%s382] sm:$0xff]
  %384 = xla_tuple %v381, %v383
  %385 = xla_tuple %384
  %v386 = vmul.f32 %v381, %v383
  %387 = xla_tuple %v386
  %s388 = scalar_lea.vmem %s2, 56
  %389 = vst [vmem:[%s388] sm:$0xff] %v386
  %s390 = scalar_lea.vmem %s0, 312
  %v391 = vld [vmem:[%s390] sm:$0xff]
  %s392 = scalar_lea.vmem %s1, 312
  %v393 = vld [vmem:[%s392] sm:$0xff]
  %394 = xla_tuple %v391, %v393
  %395 = xla_tuple %394
  %v396 = vmul.f32 %v391, %v393
  %397 = xla_tuple %v396
  %s398 = scalar_lea.vmem %s2, 312
  %399 = vst [vmem:[%s398] sm:$0xff] %v396
  %s400 = scalar_lea.vmem %s0, 72
  %v401 = vld [vmem:[%s400] sm:$0xff]
  %s402 = scalar_lea.vmem %s1, 72
  %v403 = vld [vmem:[%s402] sm:$0xff]
  %404 = xla_tuple %v401, %v403
  %405 = xla_tuple %404
  %v406 = vmul.f32 %v401, %v403
  %407 = xla_tuple %v406
  %s408 = scalar_lea.vmem %s2, 72
  %409 = vst [vmem:[%s408] sm:$0xff] %v406
  %s410 = scalar_lea.vmem %s0, 328
  %v411 = vld [vmem:[%s410] sm:$0xff]
  %s412 = scalar_lea.vmem %s1, 328
  %v413 = vld [vmem:[%s412] sm:$0xff]
  %414 = xla_tuple %v411, %v413
  %415 = xla_tuple %414
  %v416 = vmul.f32 %v411, %v413
  %417 = xla_tuple %v416
  %s418 = scalar_lea.vmem %s2, 328
  %419 = vst [vmem:[%s418] sm:$0xff] %v416
  %s420 = scalar_lea.vmem %s0, 88
  %v421 = vld [vmem:[%s420] sm:$0xff]
  %s422 = scalar_lea.vmem %s1, 88
  %v423 = vld [vmem:[%s422] sm:$0xff]
  %424 = xla_tuple %v421, %v423
  %425 = xla_tuple %424
  %v426 = vmul.f32 %v421, %v423
  %427 = xla_tuple %v426
  %s428 = scalar_lea.vmem %s2, 88
  %429 = vst [vmem:[%s428] sm:$0xff] %v426
  %s430 = scalar_lea.vmem %s0, 344
  %v431 = vld [vmem:[%s430] sm:$0xff]
  %s432 = scalar_lea.vmem %s1, 344
  %v433 = vld [vmem:[%s432] sm:$0xff]
  %434 = xla_tuple %v431, %v433
  %435 = xla_tuple %434
  %v436 = vmul.f32 %v431, %v433
  %437 = xla_tuple %v436
  %s438 = scalar_lea.vmem %s2, 344
  %439 = vst [vmem:[%s438] sm:$0xff] %v436
  %s440 = scalar_lea.vmem %s0, 104
  %v441 = vld [vmem:[%s440] sm:$0xff]
  %s442 = scalar_lea.vmem %s1, 104
  %v443 = vld [vmem:[%s442] sm:$0xff]
  %444 = xla_tuple %v441, %v443
  %445 = xla_tuple %444
  %v446 = vmul.f32 %v441, %v443
  %447 = xla_tuple %v446
  %s448 = scalar_lea.vmem %s2, 104
  %449 = vst [vmem:[%s448] sm:$0xff] %v446
  %s450 = scalar_lea.vmem %s0, 360
  %v451 = vld [vmem:[%s450] sm:$0xff]
  %s452 = scalar_lea.vmem %s1, 360
  %v453 = vld [vmem:[%s452] sm:$0xff]
  %454 = xla_tuple %v451, %v453
  %455 = xla_tuple %454
  %v456 = vmul.f32 %v451, %v453
  %457 = xla_tuple %v456
  %s458 = scalar_lea.vmem %s2, 360
  %459 = vst [vmem:[%s458] sm:$0xff] %v456
  %s460 = scalar_lea.vmem %s0, 120
  %v461 = vld [vmem:[%s460] sm:$0xff]
  %s462 = scalar_lea.vmem %s1, 120
  %v463 = vld [vmem:[%s462] sm:$0xff]
  %464 = xla_tuple %v461, %v463
  %465 = xla_tuple %464
  %v466 = vmul.f32 %v461, %v463
  %467 = xla_tuple %v466
  %s468 = scalar_lea.vmem %s2, 120
  %469 = vst [vmem:[%s468] sm:$0xff] %v466
  %s470 = scalar_lea.vmem %s0, 376
  %v471 = vld [vmem:[%s470] sm:$0xff]
  %s472 = scalar_lea.vmem %s1, 376
  %v473 = vld [vmem:[%s472] sm:$0xff]
  %474 = xla_tuple %v471, %v473
  %475 = xla_tuple %474
  %v476 = vmul.f32 %v471, %v473
  %477 = xla_tuple %v476
  %s478 = scalar_lea.vmem %s2, 376
  %479 = vst [vmem:[%s478] sm:$0xff] %v476
  %s480 = scalar_lea.vmem %s0, 136
  %v481 = vld [vmem:[%s480] sm:$0xff]
  %s482 = scalar_lea.vmem %s1, 136
  %v483 = vld [vmem:[%s482] sm:$0xff]
  %484 = xla_tuple %v481, %v483
  %485 = xla_tuple %484
  %v486 = vmul.f32 %v481, %v483
  %487 = xla_tuple %v486
  %s488 = scalar_lea.vmem %s2, 136
  %489 = vst [vmem:[%s488] sm:$0xff] %v486
  %s490 = scalar_lea.vmem %s0, 392
  %v491 = vld [vmem:[%s490] sm:$0xff]
  %s492 = scalar_lea.vmem %s1, 392
  %v493 = vld [vmem:[%s492] sm:$0xff]
  %494 = xla_tuple %v491, %v493
  %495 = xla_tuple %494
  %v496 = vmul.f32 %v491, %v493
  %497 = xla_tuple %v496
  %s498 = scalar_lea.vmem %s2, 392
  %499 = vst [vmem:[%s498] sm:$0xff] %v496
  %s500 = scalar_lea.vmem %s0, 152
  %v501 = vld [vmem:[%s500] sm:$0xff]
  %s502 = scalar_lea.vmem %s1, 152
  %v503 = vld [vmem:[%s502] sm:$0xff]
  %504 = xla_tuple %v501, %v503
  %505 = xla_tuple %504
  %v506 = vmul.f32 %v501, %v503
  %507 = xla_tuple %v506
  %s508 = scalar_lea.vmem %s2, 152
  %509 = vst [vmem:[%s508] sm:$0xff] %v506
  %s510 = scalar_lea.vmem %s0, 408
  %v511 = vld [vmem:[%s510] sm:$0xff]
  %s512 = scalar_lea.vmem %s1, 408
  %v513 = vld [vmem:[%s512] sm:$0xff]
  %514 = xla_tuple %v511, %v513
  %515 = xla_tuple %514
  %v516 = vmul.f32 %v511, %v513
  %517 = xla_tuple %v516
  %s518 = scalar_lea.vmem %s2, 408
  %519 = vst [vmem:[%s518] sm:$0xff] %v516
  %s520 = scalar_lea.vmem %s0, 168
  %v521 = vld [vmem:[%s520] sm:$0xff]
  %s522 = scalar_lea.vmem %s1, 168
  %v523 = vld [vmem:[%s522] sm:$0xff]
  %524 = xla_tuple %v521, %v523
  %525 = xla_tuple %524
  %v526 = vmul.f32 %v521, %v523
  %527 = xla_tuple %v526
  %s528 = scalar_lea.vmem %s2, 168
  %529 = vst [vmem:[%s528] sm:$0xff] %v526
  %s530 = scalar_lea.vmem %s0, 424
  %v531 = vld [vmem:[%s530] sm:$0xff]
  %s532 = scalar_lea.vmem %s1, 424
  %v533 = vld [vmem:[%s532] sm:$0xff]
  %534 = xla_tuple %v531, %v533
  %535 = xla_tuple %534
  %v536 = vmul.f32 %v531, %v533
  %537 = xla_tuple %v536
  %s538 = scalar_lea.vmem %s2, 424
  %539 = vst [vmem:[%s538] sm:$0xff] %v536
  %s540 = scalar_lea.vmem %s0, 184
  %v541 = vld [vmem:[%s540] sm:$0xff]
  %s542 = scalar_lea.vmem %s1, 184
  %v543 = vld [vmem:[%s542] sm:$0xff]
  %544 = xla_tuple %v541, %v543
  %545 = xla_tuple %544
  %v546 = vmul.f32 %v541, %v543
  %547 = xla_tuple %v546
  %s548 = scalar_lea.vmem %s2, 184
  %549 = vst [vmem:[%s548] sm:$0xff] %v546
  %s550 = scalar_lea.vmem %s0, 440
  %v551 = vld [vmem:[%s550] sm:$0xff]
  %s552 = scalar_lea.vmem %s1, 440
  %v553 = vld [vmem:[%s552] sm:$0xff]
  %554 = xla_tuple %v551, %v553
  %555 = xla_tuple %554
  %v556 = vmul.f32 %v551, %v553
  %557 = xla_tuple %v556
  %s558 = scalar_lea.vmem %s2, 440
  %559 = vst [vmem:[%s558] sm:$0xff] %v556
  %s560 = scalar_lea.vmem %s0, 200
  %v561 = vld [vmem:[%s560] sm:$0xff]
  %s562 = scalar_lea.vmem %s1, 200
  %v563 = vld [vmem:[%s562] sm:$0xff]
  %564 = xla_tuple %v561, %v563
  %565 = xla_tuple %564
  %v566 = vmul.f32 %v561, %v563
  %567 = xla_tuple %v566
  %s568 = scalar_lea.vmem %s2, 200
  %569 = vst [vmem:[%s568] sm:$0xff] %v566
  %s570 = scalar_lea.vmem %s0, 456
  %v571 = vld [vmem:[%s570] sm:$0xff]
  %s572 = scalar_lea.vmem %s1, 456
  %v573 = vld [vmem:[%s572] sm:$0xff]
  %574 = xla_tuple %v571, %v573
  %575 = xla_tuple %574
  %v576 = vmul.f32 %v571, %v573
  %577 = xla_tuple %v576
  %s578 = scalar_lea.vmem %s2, 456
  %579 = vst [vmem:[%s578] sm:$0xff] %v576
  %s580 = scalar_lea.vmem %s0, 216
  %v581 = vld [vmem:[%s580] sm:$0xff]
  %s582 = scalar_lea.vmem %s1, 216
  %v583 = vld [vmem:[%s582] sm:$0xff]
  %584 = xla_tuple %v581, %v583
  %585 = xla_tuple %584
  %v586 = vmul.f32 %v581, %v583
  %587 = xla_tuple %v586
  %s588 = scalar_lea.vmem %s2, 216
  %589 = vst [vmem:[%s588] sm:$0xff] %v586
  %s590 = scalar_lea.vmem %s0, 472
  %v591 = vld [vmem:[%s590] sm:$0xff]
  %s592 = scalar_lea.vmem %s1, 472
  %v593 = vld [vmem:[%s592] sm:$0xff]
  %594 = xla_tuple %v591, %v593
  %595 = xla_tuple %594
  %v596 = vmul.f32 %v591, %v593
  %597 = xla_tuple %v596
  %s598 = scalar_lea.vmem %s2, 472
  %599 = vst [vmem:[%s598] sm:$0xff] %v596
  %s600 = scalar_lea.vmem %s0, 232
  %v601 = vld [vmem:[%s600] sm:$0xff]
  %s602 = scalar_lea.vmem %s1, 232
  %v603 = vld [vmem:[%s602] sm:$0xff]
  %604 = xla_tuple %v601, %v603
  %605 = xla_tuple %604
  %v606 = vmul.f32 %v601, %v603
  %607 = xla_tuple %v606
  %s608 = scalar_lea.vmem %s2, 232
  %609 = vst [vmem:[%s608] sm:$0xff] %v606
  %s610 = scalar_lea.vmem %s0, 488
  %v611 = vld [vmem:[%s610] sm:$0xff]
  %s612 = scalar_lea.vmem %s1, 488
  %v613 = vld [vmem:[%s612] sm:$0xff]
  %614 = xla_tuple %v611, %v613
  %615 = xla_tuple %614
  %v616 = vmul.f32 %v611, %v613
  %617 = xla_tuple %v616
  %s618 = scalar_lea.vmem %s2, 488
  %619 = vst [vmem:[%s618] sm:$0xff] %v616
  %s620 = scalar_lea.vmem %s0, 248
  %v621 = vld [vmem:[%s620] sm:$0xff]
  %s622 = scalar_lea.vmem %s1, 248
  %v623 = vld [vmem:[%s622] sm:$0xff]
  %624 = xla_tuple %v621, %v623
  %625 = xla_tuple %624
  %v626 = vmul.f32 %v621, %v623
  %627 = xla_tuple %v626
  %s628 = scalar_lea.vmem %s2, 248
  %629 = vst [vmem:[%s628] sm:$0xff] %v626
  %s630 = scalar_lea.vmem %s0, 504
  %v631 = vld [vmem:[%s630] sm:$0xff]
  %s632 = scalar_lea.vmem %s1, 504
  %v633 = vld [vmem:[%s632] sm:$0xff]
  %634 = xla_tuple %v631, %v633
  %635 = xla_tuple %634
  %v636 = vmul.f32 %v631, %v633
  %637 = xla_tuple %v636
  %s638 = scalar_lea.vmem %s2, 504
  %639 = vst [vmem:[%s638] sm:$0xff] %v636

// kernel: alexnet_forward.8
$region0: #{alexnet_forward.8}
  #allocation0 [shape = 'u32[]', space=smem, size = 0x4, offset = 0x4, fixed_abs, tag = 'smem constant byte address 0x4 - core index']
  #allocation1 [shape = 'u32[144,128]{1,0:T(1,128)}', space=vmem, size = 0x12000, scoped, tag = 'internal scratch']
  %s0 = inlined_call_operand.vmem [shape: bf16[512,128], index: 0, kind: input, shape index: {}]
  %s1 = inlined_call_operand.vmem [shape: bf16[128,128], index: 1, kind: input, shape index: {}]
  %s2 = inlined_call_operand.vmem [shape: f32[1,128], index: 2, kind: input, shape index: {}]
  %s3 = inlined_call_operand.vmem [shape: f32[512,128], index: 3, kind: output, shape index: {}]
  %s4 = sld [smem:[#allocation0]]
  $region45: #{alexnet_forward.8} parent=0
    _
  %s6 = ssub.s32 1, %s4
  %s7 = scalar_select 0, %s6, %s4
  loop: start=0, step=1, limit=4
  $region2: #{alexnet_forward.8} parent=0 // loop_pre_header
    _
  $region3: #{alexnet_forward.8} parent=0 // loop_header
    %s9 = sphi 0, %s13
    %p10 = scmp.ge.s32.totalorder %s9, 4
    %s19 = sphi 0, %s21
    %s22 = sphi 0, %s19
    %s23 = sphi 0, %s22
    %s39 = sphi 0, %s23
    %s43 = sphi 0, %s43
    %s45 = sphi 0, %s43
    %s46 = sphi 0, %s45
    %s60 = sphi 0, %s46
    %s64 = sphi 0, %s64
    %s66 = sphi 0, %s64
    %s67 = sphi 0, %s66
    %s81 = sphi 0, %s67
    %s87 = sphi 0, %s89
    %s90 = sphi 0, %s87
    %s91 = sphi 0, %s90
    %s107 = sphi 0, %s91
  $region4: #{alexnet_forward.8} parent=0 // loop_header_branch
    %12 = sbr.rel (%p10) target = $region8
  $region5: #{alexnet_forward.8} parent=0 // loop_body
    %s14 = ssub.s32 %s9, 1
    %s15 = ssub.s32 %s9, 2
    %s16 = sadd.s32 %s9, 1
    %s17 = ssub.s32 %s9, %s16
    %p18 = scmp.eq.s32.totalorder %s17, 0
    %s20 = sadd.s32 %s19, 1
    %s21 = scalar_select %p18, %s19, %s20
    %p24 = pneg %p18
    %p25 = scmp.eq.s32.totalorder %s9, 1
    %p26 = por %p24, %p25
    %p27 = scmp.ne.s32.totalorder %s19, %s22
    %p28 = scmp.eq.s32.totalorder %s9, 0
    %p29 = por %p27, %p28
    %p30 = scmp.ne.s32.totalorder %s19, %s22
    %p31 = scmp.eq.s32.totalorder %s14, 1
    %p32 = por %p30, %p31
    %p33 = scmp.ne.s32.totalorder %s22, %s23
    %p34 = scmp.eq.s32.totalorder %s14, 0
    %p35 = por %p33, %p34
    %p36 = scmp.ne.s32.totalorder %s22, %s23
    %p37 = scmp.eq.s32.totalorder %s15, 1
    %p38 = por %p36, %p37
    %p40 = scmp.ne.s32.totalorder %s23, %s39
    %p41 = scmp.eq.s32.totalorder %s15, 0
    %p42 = por %p40, %p41
    %s44 = sadd.s32 %s43, 1
    %p47 = scmp.eq.s32.totalorder %s9, 1
    %p48 = scmp.ne.s32.totalorder %s43, %s45
    %p49 = scmp.eq.s32.totalorder %s9, 0
    %p50 = por %p48, %p49
    %p51 = scmp.ne.s32.totalorder %s43, %s45
    %p52 = scmp.eq.s32.totalorder %s14, 1
    %p53 = por %p51, %p52
    %p54 = scmp.ne.s32.totalorder %s45, %s46
    %p55 = scmp.eq.s32.totalorder %s14, 0
    %p56 = por %p54, %p55
    %p57 = scmp.ne.s32.totalorder %s45, %s46
    %p58 = scmp.eq.s32.totalorder %s15, 1
    %p59 = por %p57, %p58
    %p61 = scmp.ne.s32.totalorder %s46, %s60
    %p62 = scmp.eq.s32.totalorder %s15, 0
    %p63 = por %p61, %p62
    %s65 = sadd.s32 %s64, 1
    %p68 = scmp.eq.s32.totalorder %s9, 1
    %p69 = scmp.ne.s32.totalorder %s64, %s66
    %p70 = scmp.eq.s32.totalorder %s9, 0
    %p71 = por %p69, %p70
    %p72 = scmp.ne.s32.totalorder %s64, %s66
    %p73 = scmp.eq.s32.totalorder %s14, 1
    %p74 = por %p72, %p73
    %p75 = scmp.ne.s32.totalorder %s66, %s67
    %p76 = scmp.eq.s32.totalorder %s14, 0
    %p77 = por %p75, %p76
    %p78 = scmp.ne.s32.totalorder %s66, %s67
    %p79 = scmp.eq.s32.totalorder %s15, 1
    %p80 = por %p78, %p79
    %p82 = scmp.ne.s32.totalorder %s67, %s81
    %p83 = scmp.eq.s32.totalorder %s15, 0
    %p84 = por %p82, %p83
    %s85 = ssub.s32 %s9, %s16
    %p86 = scmp.eq.s32.totalorder %s85, 0
    %s88 = sadd.s32 %s87, 1
    %s89 = scalar_select %p86, %s87, %s88
    %p92 = pneg %p86
    %p93 = scmp.eq.s32.totalorder %s9, 1
    %p94 = por %p92, %p93
    %p95 = scmp.ne.s32.totalorder %s87, %s90
    %p96 = scmp.eq.s32.totalorder %s9, 0
    %p97 = por %p95, %p96
    %p98 = scmp.ne.s32.totalorder %s87, %s90
    %p99 = scmp.eq.s32.totalorder %s14, 1
    %p100 = por %p98, %p99
    %p101 = scmp.ne.s32.totalorder %s90, %s91
    %p102 = scmp.eq.s32.totalorder %s14, 0
    %p103 = por %p101, %p102
    %p104 = scmp.ne.s32.totalorder %s90, %s91
    %p105 = scmp.eq.s32.totalorder %s15, 1
    %p106 = por %p104, %p105
    %p108 = scmp.ne.s32.totalorder %s91, %s107
    %p109 = scmp.eq.s32.totalorder %s15, 0
    %p110 = por %p108, %p109
    %p111 = scmp.le.s32.totalorder 1, %s9
    %p112 = scmp.lt.s32.totalorder %s9, 3
    %p113 = pnand %p111, %p112
    %p114 = pneg %p113
    // Predicated region
    $region9: #{alexnet_forward.8} parent=5 // pred_check
      _
    $region10: #{alexnet_forward.8} parent=5 // pred_check_branch
      %116 = sbr.rel (%p113) target = $region12
    $region11: #{alexnet_forward.8} parent=5 // pred_region
      %s117 = ssub.s32 %s9, 1
      // Predicated region
      $region13: #{alexnet_forward.8} parent=11 // pred_check
        %p118 = pneg %p56
      $region14: #{alexnet_forward.8} parent=11 // pred_check_branch
        %120 = sbr.rel (%p118) target = $region16
      $region15: #{alexnet_forward.8} parent=11 // pred_region
        _
      $region16: #{alexnet_forward.8} parent=11 // pred_fallthru
        _
      // Predicated region
      $region17: #{alexnet_forward.8} parent=11 // pred_check
        %p121 = pneg %p77
      $region18: #{alexnet_forward.8} parent=11 // pred_check_branch
        %123 = sbr.rel (%p121) target = $region20
      $region19: #{alexnet_forward.8} parent=11 // pred_region
        _
      $region20: #{alexnet_forward.8} parent=11 // pred_fallthru
        _
    $region12: #{alexnet_forward.8} parent=5 // pred_fallthru
      _
    %p124 = scmp.lt.s32.totalorder %s9, 2
    // Predicated region
    $region21: #{alexnet_forward.8} parent=5 // pred_check
      %p125 = pneg %p124
    $region22: #{alexnet_forward.8} parent=5 // pred_check_branch
      %127 = sbr.rel (%p125) target = $region24
    $region23: #{alexnet_forward.8} parent=5 // pred_region
      // Predicated region
      $region25: #{alexnet_forward.8} parent=23 // pred_check
        %p128 = pneg %p29
      $region26: #{alexnet_forward.8} parent=23 // pred_check_branch
        %130 = sbr.rel (%p128) target = $region28
      $region27: #{alexnet_forward.8} parent=23 // pred_region
        %s131 = smul.u32 32, %s9
        %p132 = scmp.lt.s32.totalorder %s131, 63
        %s133 = scalar_select %p132, %s131, 63
        %s134 = smul.addr %s133, 4
        %s135 = scalar_lea.vmem %s0, %s134
        %s136 = smul.u32 32, %s9
      $region28: #{alexnet_forward.8} parent=23 // pred_fallthru
        _
    $region24: #{alexnet_forward.8} parent=5 // pred_fallthru
      _
    %p137 = scmp.le.s32.totalorder 1, %s9
    %p138 = scmp.lt.s32.totalorder %s9, 3
    %p139 = pnand %p137, %p138
    %p140 = pneg %p139
    // Predicated region
    $region29: #{alexnet_forward.8} parent=5 // pred_check
      _
    $region30: #{alexnet_forward.8} parent=5 // pred_check_branch
      %142 = sbr.rel (%p139) target = $region32
    $region31: #{alexnet_forward.8} parent=5 // pred_region
      %s143 = ssub.s32 %s9, 1
      %s144 = smul.u32 32, %s14
      %p145 = scmp.lt.s32.totalorder %s144, 63
      %s146 = scalar_select %p145, %s144, 63
      %s147 = smul.addr %s146, 4
      %s148 = scalar_lea.vmem %s0, %s147
      %p149 = pneg %p35
      %p150 = pneg %p32
      %p151 = pneg %p56
      %p152 = pneg %p53
      %p153 = pneg %p77
      %p154 = pneg %p74
      %p155 = pneg %p103
      %p156 = pneg %p100
      %s157 = smul.u32 32, %s14
      %p158 = scmp.lt.s32.totalorder %s157, 63
      %s159 = scalar_select %p158, %s157, 63
      %s160 = smul.addr %s159, 8
      %s161 = scalar_lea.vmem %s3, %s160
      %s162 = smul.u32 32, %s14
      %p163 = scmp.lt.s32.totalorder %s162, 63
      %s164 = scalar_select %p163, %s162, 63
      %s165 = smul.addr %s164, 4
      %s166 = scalar_lea.vmem %s0, %s165
      %s167 = smul.u32 32, %s14
      %s168 = smul.u32 32, %s14
      %p169 = scmp.lt.s32.totalorder %s168, 63
      %s170 = scalar_select %p169, %s168, 63
      %s171 = smul.addr %s170, 8
      %s172 = scalar_lea.vmem %s3, %s171
      %s173 = smul.u32 32, %s14
      %v175 = vld [vmem:[%s166] sm:$0xf]
      %v176 = vld [vmem:[%s166 + $0x4] sm:$0xf]
      %v177 = vld [vmem:[%s166 + $0x8] sm:$0xf]
      %v178 = vld [vmem:[%s166 + $0xc] sm:$0xf]
      %v179 = vld [vmem:[%s166 + $0x10] sm:$0xf]
      %v180 = vld [vmem:[%s166 + $0x14] sm:$0xf]
      %v181 = vld [vmem:[%s166 + $0x18] sm:$0xf]
      %v182 = vld [vmem:[%s166 + $0x1c] sm:$0xf]
      %v183 = vld [vmem:[%s166 + $0x20] sm:$0xf]
      %v184 = vld [vmem:[%s166 + $0x24] sm:$0xf]
      %v185 = vld [vmem:[%s166 + $0x28] sm:$0xf]
      %v186 = vld [vmem:[%s166 + $0x2c] sm:$0xf]
      %v187 = vld [vmem:[%s166 + $0x30] sm:$0xf]
      %v188 = vld [vmem:[%s166 + $0x34] sm:$0xf]
      %v189 = vld [vmem:[%s166 + $0x38] sm:$0xf]
      %v190 = vld [vmem:[%s166 + $0x3c] sm:$0xf]
      %v191 = vld [vmem:[%s166 + $0x40] sm:$0xf]
      %v192 = vld [vmem:[%s166 + $0x44] sm:$0xf]
      %v193 = vld [vmem:[%s166 + $0x48] sm:$0xf]
      %v194 = vld [vmem:[%s166 + $0x4c] sm:$0xf]
      %v195 = vld [vmem:[%s166 + $0x50] sm:$0xf]
      %v196 = vld [vmem:[%s166 + $0x54] sm:$0xf]
      %v197 = vld [vmem:[%s166 + $0x58] sm:$0xf]
      %v198 = vld [vmem:[%s166 + $0x5c] sm:$0xf]
      %v199 = vld [vmem:[%s166 + $0x60] sm:$0xf]
      %v200 = vld [vmem:[%s166 + $0x64] sm:$0xf]
      %v201 = vld [vmem:[%s166 + $0x68] sm:$0xf]
      %v202 = vld [vmem:[%s166 + $0x6c] sm:$0xf]
      %v203 = vld [vmem:[%s166 + $0x70] sm:$0xf]
      %v204 = vld [vmem:[%s166 + $0x74] sm:$0xf]
      %v205 = vld [vmem:[%s166 + $0x78] sm:$0xf]
      %v206 = vld [vmem:[%s166 + $0x7c] sm:$0xf]
      %v207 = vld [vmem:[%s1] sm:$0xf]
      %v208 = vld [vmem:[%s1 + $0x4] sm:$0xf]
      %v209 = vld [vmem:[%s1 + $0x8] sm:$0xf]
      %v210 = vld [vmem:[%s1 + $0xc] sm:$0xf]
      %v211 = vld [vmem:[%s1 + $0x10] sm:$0xf]
      %v212 = vld [vmem:[%s1 + $0x14] sm:$0xf]
      %v213 = vld [vmem:[%s1 + $0x18] sm:$0xf]
      %v214 = vld [vmem:[%s1 + $0x1c] sm:$0xf]
      %v215 = vld [vmem:[%s1 + $0x20] sm:$0xf]
      %v216 = vld [vmem:[%s1 + $0x24] sm:$0xf]
      %v217 = vld [vmem:[%s1 + $0x28] sm:$0xf]
      %v218 = vld [vmem:[%s1 + $0x2c] sm:$0xf]
      %v219 = vld [vmem:[%s1 + $0x30] sm:$0xf]
      %v220 = vld [vmem:[%s1 + $0x34] sm:$0xf]
      %v221 = vld [vmem:[%s1 + $0x38] sm:$0xf]
      %v222 = vld [vmem:[%s1 + $0x3c] sm:$0xf]
      %v223 = vld [vmem:[%s2] sm:$0x1]
      %v225 = vlaneseq
      %v226 = vshrl.u32 %v225, 7
      %v227 = vsub.s32 0, %v226
      %v228 = vrot.slane %v223, %v227
      %v262 = vunpack.c.l.b16 %v175
      %v263 = vunpack.c.l.b16 %v176
      %v264 = vunpack.c.l.b16 %v177
      %v265 = vunpack.c.l.b16 %v178
      %v266 = vunpack.c.l.b16 %v179
      %v267 = vunpack.c.l.b16 %v180
      %v268 = vunpack.c.l.b16 %v181
      %v269 = vunpack.c.l.b16 %v182
      %v270 = vunpack.c.l.b16 %v183
      %v271 = vunpack.c.l.b16 %v184
      %v272 = vunpack.c.l.b16 %v185
      %v273 = vunpack.c.l.b16 %v186
      %v274 = vunpack.c.l.b16 %v187
      %v275 = vunpack.c.l.b16 %v188
      %v276 = vunpack.c.l.b16 %v189
      %v277 = vunpack.c.l.b16 %v190
      %v278 = vunpack.c.l.b16 %v191
      %v279 = vunpack.c.l.b16 %v192
      %v280 = vunpack.c.l.b16 %v193
      %v281 = vunpack.c.l.b16 %v194
      %v282 = vunpack.c.l.b16 %v195
      %v283 = vunpack.c.l.b16 %v196
      %v284 = vunpack.c.l.b16 %v197
      %v285 = vunpack.c.l.b16 %v198
      %v286 = vunpack.c.l.b16 %v199
      %v287 = vunpack.c.l.b16 %v200
      %v288 = vunpack.c.l.b16 %v201
      %v289 = vunpack.c.l.b16 %v202
      %v290 = vunpack.c.l.b16 %v203
      %v291 = vunpack.c.l.b16 %v204
      %v292 = vunpack.c.l.b16 %v205
      %v293 = vunpack.c.l.b16 %v206
      %v294 = vpack.c.b16 %v263, %v262
      %v295 = vpack.c.b16 %v265, %v264
      %v296 = vpack.c.b16 %v267, %v266
      %v297 = vpack.c.b16 %v269, %v268
      %v298 = vpack.c.b16 %v271, %v270
      %v299 = vpack.c.b16 %v273, %v272
      %v300 = vpack.c.b16 %v275, %v274
      %v301 = vpack.c.b16 %v277, %v276
      %v302 = vpack.c.b16 %v279, %v278
      %v303 = vpack.c.b16 %v281, %v280
      %v304 = vpack.c.b16 %v283, %v282
      %v305 = vpack.c.b16 %v285, %v284
      %v306 = vpack.c.b16 %v287, %v286
      %v307 = vpack.c.b16 %v289, %v288
      %v308 = vpack.c.b16 %v291, %v290
      %v309 = vpack.c.b16 %v293, %v292
      %v342 = vunpack.c.l.b16 %v207
      %v343 = vunpack.c.l.b16 %v208
      %v344 = vunpack.c.l.b16 %v209
      %v345 = vunpack.c.l.b16 %v210
      %v346 = vunpack.c.l.b16 %v211
      %v347 = vunpack.c.l.b16 %v212
      %v348 = vunpack.c.l.b16 %v213
      %v349 = vunpack.c.l.b16 %v214
      %v350 = vunpack.c.l.b16 %v215
      %v351 = vunpack.c.l.b16 %v216
      %v352 = vunpack.c.l.b16 %v217
      %v353 = vunpack.c.l.b16 %v218
      %v354 = vunpack.c.l.b16 %v219
      %v355 = vunpack.c.l.b16 %v220
      %v356 = vunpack.c.l.b16 %v221
      %v357 = vunpack.c.l.b16 %v222
      %v358 = vpack.c.b16 %v343, %v342
      %v359 = vpack.c.b16 %v345, %v344
      %v360 = vpack.c.b16 %v347, %v346
      %v361 = vpack.c.b16 %v349, %v348
      %v362 = vpack.c.b16 %v351, %v350
      %v363 = vpack.c.b16 %v353, %v352
      %v364 = vpack.c.b16 %v355, %v354
      %v365 = vpack.c.b16 %v357, %v356
      %374 = vmatprep.subr.bf16.mxu0 0
      %375 = vmatpush1.bf16.msra.mxu0 %v358
      %376 = vmatprep.subr.bf16.mxu0 0
      %377 = vmatpush1.bf16.msra.mxu0 %v359
      %378 = vmatprep.subr.bf16.mxu0 0
      %379 = vmatpush1.bf16.msra.mxu0 %v360
      %380 = vmatprep.subr.bf16.mxu0 0
      %381 = vmatpush1.bf16.msra.mxu0 %v361
      %382 = vmatprep.subr.bf16.mxu0 0
      %383 = vmatpush1.bf16.msra.mxu0 %v362
      %384 = vmatprep.subr.bf16.mxu0 0
      %385 = vmatpush1.bf16.msra.mxu0 %v363
      %386 = vmatprep.subr.bf16.mxu0 0
      %387 = vmatpush1.bf16.msra.mxu0 %v364
      %388 = vmatprep.subr.bf16.mxu0 0
      %389 = vmatpush1.bf16.msra.mxu0 %v365
      %390 = vmatprep.subr.bf16.mxu0 0
      %391 = vmatpush1.bf16.msra.mxu0 0
      %392 = vmatprep.subr.bf16.mxu0 0
      %393 = vmatpush1.bf16.msra.mxu0 0
      %394 = vmatprep.subr.bf16.mxu0 0
      %395 = vmatpush1.bf16.msra.mxu0 0
      %396 = vmatprep.subr.bf16.mxu0 0
      %397 = vmatpush1.bf16.msra.mxu0 0
      %398 = vmatprep.subr.bf16.mxu0 0
      %399 = vmatpush1.bf16.msra.mxu0 0
      %400 = vmatprep.subr.bf16.mxu0 0
      %401 = vmatpush1.bf16.msra.mxu0 0
      %402 = vmatprep.subr.bf16.mxu0 0
      %403 = vmatpush1.bf16.msra.mxu0 0
      %404 = vmatprep.subr.bf16.mxu0 0
      %405 = vmatpush1.bf16.msra.mxu0 0
      %406 = vmatprep.mubr.bf16.mxu0 0
      %407 = vmatmul.mubr.bf16.gmra.mrb[0].mxu0 %v294
      %v408 = vpop.f32.mrb[0].mxu0
      %v409 = vadd.f32 %v228, %v408
      %v410 = vpop.f32.mrb[0].mxu0
      %v411 = vpop.f32.mrb[0].mxu0
      %v412 = vadd.f32 %v228, %v411
      %v413 = vpop.f32.mrb[0].mxu0
      %414 = vmatprep.mubr.bf16.mxu0 0
      %415 = vmatmul.mubr.bf16.gmra.mrb[0].mxu0 %v295
      %v416 = vpop.f32.mrb[0].mxu0
      %v417 = vadd.f32 %v228, %v416
      %v418 = vpop.f32.mrb[0].mxu0
      %v419 = vpop.f32.mrb[0].mxu0
      %v420 = vadd.f32 %v228, %v419
      %v421 = vpop.f32.mrb[0].mxu0
      %422 = vmatprep.mubr.bf16.mxu0 0
      %423 = vmatmul.mubr.bf16.gmra.mrb[0].mxu0 %v296
      %v424 = vpop.f32.mrb[0].mxu0
      %v425 = vadd.f32 %v228, %v424
      %v426 = vpop.f32.mrb[0].mxu0
      %v427 = vpop.f32.mrb[0].mxu0
      %v428 = vadd.f32 %v228, %v427
      %v429 = vpop.f32.mrb[0].mxu0
      %430 = vmatprep.mubr.bf16.mxu0 0
      %431 = vmatmul.mubr.bf16.gmra.mrb[0].mxu0 %v297
      %v432 = vpop.f32.mrb[0].mxu0
      %v433 = vadd.f32 %v228, %v432
      %v434 = vpop.f32.mrb[0].mxu0
      %v435 = vpop.f32.mrb[0].mxu0
      %v436 = vadd.f32 %v228, %v435
      %v437 = vpop.f32.mrb[0].mxu0
      %438 = vmatprep.mubr.bf16.mxu0 0
      %439 = vmatmul.mubr.bf16.gmra.mrb[0].mxu0 %v298
      %v440 = vpop.f32.mrb[0].mxu0
      %v441 = vadd.f32 %v228, %v440
      %v442 = vpop.f32.mrb[0].mxu0
      %v443 = vpop.f32.mrb[0].mxu0
      %v444 = vadd.f32 %v228, %v443
      %v445 = vpop.f32.mrb[0].mxu0
      %446 = vmatprep.mubr.bf16.mxu0 0
      %447 = vmatmul.mubr.bf16.gmra.mrb[0].mxu0 %v299
      %v448 = vpop.f32.mrb[0].mxu0
      %v449 = vadd.f32 %v228, %v448
      %v450 = vpop.f32.mrb[0].mxu0
      %v451 = vpop.f32.mrb[0].mxu0
      %v452 = vadd.f32 %v228, %v451
      %v453 = vpop.f32.mrb[0].mxu0
      %454 = vmatprep.mubr.bf16.mxu0 0
      %455 = vmatmul.mubr.bf16.gmra.mrb[0].mxu0 %v300
      %v456 = vpop.f32.mrb[0].mxu0
      %v457 = vadd.f32 %v228, %v456
      %v458 = vpop.f32.mrb[0].mxu0
      %v459 = vpop.f32.mrb[0].mxu0
      %v460 = vadd.f32 %v228, %v459
      %v461 = vpop.f32.mrb[0].mxu0
      %462 = vmatprep.mubr.bf16.mxu0 0
      %463 = vmatmul.mubr.bf16.gmra.mrb[0].mxu0 %v301
      %v464 = vpop.f32.mrb[0].mxu0
      %v465 = vadd.f32 %v228, %v464
      %v466 = vpop.f32.mrb[0].mxu0
      %v467 = vpop.f32.mrb[0].mxu0
      %v468 = vadd.f32 %v228, %v467
      %v469 = vpop.f32.mrb[0].mxu0
      %470 = vmatprep.mubr.bf16.mxu0 0
      %471 = vmatmul.mubr.bf16.gmra.mrb[0].mxu0 %v302
      %v472 = vpop.f32.mrb[0].mxu0
      %v473 = vadd.f32 %v228, %v472
      %v474 = vpop.f32.mrb[0].mxu0
      %v475 = vpop.f32.mrb[0].mxu0
      %v476 = vadd.f32 %v228, %v475
      %v477 = vpop.f32.mrb[0].mxu0
      %478 = vmatprep.mubr.bf16.mxu0 0
      %479 = vmatmul.mubr.bf16.gmra.mrb[0].mxu0 %v303
      %v480 = vpop.f32.mrb[0].mxu0
      %v481 = vadd.f32 %v228, %v480
      %v482 = vpop.f32.mrb[0].mxu0
      %v483 = vpop.f32.mrb[0].mxu0
      %v484 = vadd.f32 %v228, %v483
      %v485 = vpop.f32.mrb[0].mxu0
      %486 = vmatprep.mubr.bf16.mxu0 0
      %487 = vmatmul.mubr.bf16.gmra.mrb[0].mxu0 %v304
      %v488 = vpop.f32.mrb[0].mxu0
      %v489 = vadd.f32 %v228, %v488
      %v490 = vpop.f32.mrb[0].mxu0
      %v491 = vpop.f32.mrb[0].mxu0
      %v492 = vadd.f32 %v228, %v491
      %v493 = vpop.f32.mrb[0].mxu0
      %494 = vmatprep.mubr.bf16.mxu0 0
      %495 = vmatmul.mubr.bf16.gmra.mrb[0].mxu0 %v305
      %v496 = vpop.f32.mrb[0].mxu0
      %v497 = vadd.f32 %v228, %v496
      %v498 = vpop.f32.mrb[0].mxu0
      %v499 = vpop.f32.mrb[0].mxu0
      %v500 = vadd.f32 %v228, %v499
      %v501 = vpop.f32.mrb[0].mxu0
      %502 = vmatprep.mubr.bf16.mxu0 0
      %503 = vmatmul.mubr.bf16.gmra.mrb[0].mxu0 %v306
      %v504 = vpop.f32.mrb[0].mxu0
      %v505 = vadd.f32 %v228, %v504
      %v506 = vpop.f32.mrb[0].mxu0
      %v507 = vpop.f32.mrb[0].mxu0
      %v508 = vadd.f32 %v228, %v507
      %v509 = vpop.f32.mrb[0].mxu0
      %510 = vmatprep.mubr.bf16.mxu0 0
      %511 = vmatmul.mubr.bf16.gmra.mrb[0].mxu0 %v307
      %v512 = vpop.f32.mrb[0].mxu0
      %v513 = vadd.f32 %v228, %v512
      %v514 = vpop.f32.mrb[0].mxu0
      %v515 = vpop.f32.mrb[0].mxu0
      %v516 = vadd.f32 %v228, %v515
      %v517 = vpop.f32.mrb[0].mxu0
      %518 = vmatprep.mubr.bf16.mxu0 0
      %519 = vmatmul.mubr.bf16.gmra.mrb[0].mxu0 %v308
      %v520 = vpop.f32.mrb[0].mxu0
      %v521 = vadd.f32 %v228, %v520
      %v522 = vpop.f32.mrb[0].mxu0
      %v523 = vpop.f32.mrb[0].mxu0
      %v524 = vadd.f32 %v228, %v523
      %v525 = vpop.f32.mrb[0].mxu0
      %526 = vmatprep.mubr.bf16.mxu0 0
      %527 = vmatmul.mubr.bf16.gmra.mrb[0].mxu0 %v309
      %v528 = vpop.f32.mrb[0].mxu0
      %v529 = vadd.f32 %v228, %v528
      %v530 = vpop.f32.mrb[0].mxu0
      %v531 = vpop.f32.mrb[0].mxu0
      %v532 = vadd.f32 %v228, %v531
      %v533 = vpop.f32.mrb[0].mxu0
      %534 = vdwg.mxu0
      %v535 = vmax.f32 %v409, 0.0
      %v536 = vmax.f32 %v412, 0.0
      %v537 = vmax.f32 %v417, 0.0
      %v538 = vmax.f32 %v420, 0.0
      %v539 = vmax.f32 %v425, 0.0
      %v540 = vmax.f32 %v428, 0.0
      %v541 = vmax.f32 %v433, 0.0
      %v542 = vmax.f32 %v436, 0.0
      %v543 = vmax.f32 %v441, 0.0
      %v544 = vmax.f32 %v444, 0.0
      %v545 = vmax.f32 %v449, 0.0
      %v546 = vmax.f32 %v452, 0.0
      %v547 = vmax.f32 %v457, 0.0
      %v548 = vmax.f32 %v460, 0.0
      %v549 = vmax.f32 %v465, 0.0
      %v550 = vmax.f32 %v468, 0.0
      %v551 = vmax.f32 %v473, 0.0
      %v552 = vmax.f32 %v476, 0.0
      %v553 = vmax.f32 %v481, 0.0
      %v554 = vmax.f32 %v484, 0.0
      %v555 = vmax.f32 %v489, 0.0
      %v556 = vmax.f32 %v492, 0.0
      %v557 = vmax.f32 %v497, 0.0
      %v558 = vmax.f32 %v500, 0.0
      %v559 = vmax.f32 %v505, 0.0
      %v560 = vmax.f32 %v508, 0.0
      %v561 = vmax.f32 %v513, 0.0
      %v562 = vmax.f32 %v516, 0.0
      %v563 = vmax.f32 %v521, 0.0
      %v564 = vmax.f32 %v524, 0.0
      %v565 = vmax.f32 %v529, 0.0
      %v566 = vmax.f32 %v532, 0.0
      %567 = vst [vmem:[%s172] sm:$0xff] %v535
      %568 = vst [vmem:[%s172 + $0x8] sm:$0xff] %v536
      %569 = vst [vmem:[%s172 + $0x10] sm:$0xff] %v537
      %570 = vst [vmem:[%s172 + $0x18] sm:$0xff] %v538
      %571 = vst [vmem:[%s172 + $0x20] sm:$0xff] %v539
      %572 = vst [vmem:[%s172 + $0x28] sm:$0xff] %v540
      %573 = vst [vmem:[%s172 + $0x30] sm:$0xff] %v541
      %574 = vst [vmem:[%s172 + $0x38] sm:$0xff] %v542
      %575 = vst [vmem:[%s172 + $0x40] sm:$0xff] %v543
      %576 = vst [vmem:[%s172 + $0x48] sm:$0xff] %v544
      %577 = vst [vmem:[%s172 + $0x50] sm:$0xff] %v545
      %578 = vst [vmem:[%s172 + $0x58] sm:$0xff] %v546
      %579 = vst [vmem:[%s172 + $0x60] sm:$0xff] %v547
      %580 = vst [vmem:[%s172 + $0x68] sm:$0xff] %v548
      %581 = vst [vmem:[%s172 + $0x70] sm:$0xff] %v549
      %582 = vst [vmem:[%s172 + $0x78] sm:$0xff] %v550
      %583 = vst [vmem:[%s172 + $0x80] sm:$0xff] %v551
      %584 = vst [vmem:[%s172 + $0x88] sm:$0xff] %v552
      %585 = vst [vmem:[%s172 + $0x90] sm:$0xff] %v553
      %586 = vst [vmem:[%s172 + $0x98] sm:$0xff] %v554
      %587 = vst [vmem:[%s172 + $0xa0] sm:$0xff] %v555
      %588 = vst [vmem:[%s172 + $0xa8] sm:$0xff] %v556
      %589 = vst [vmem:[%s172 + $0xb0] sm:$0xff] %v557
      %590 = vst [vmem:[%s172 + $0xb8] sm:$0xff] %v558
      %591 = vst [vmem:[%s172 + $0xc0] sm:$0xff] %v559
      %592 = vst [vmem:[%s172 + $0xc8] sm:$0xff] %v560
      %593 = vst [vmem:[%s172 + $0xd0] sm:$0xff] %v561
      %594 = vst [vmem:[%s172 + $0xd8] sm:$0xff] %v562
      %595 = vst [vmem:[%s172 + $0xe0] sm:$0xff] %v563
      %596 = vst [vmem:[%s172 + $0xe8] sm:$0xff] %v564
      %597 = vst [vmem:[%s172 + $0xf0] sm:$0xff] %v565
      %598 = vst [vmem:[%s172 + $0xf8] sm:$0xff] %v566
      %s599 = smul.u32 32, %s14
      %p600 = scmp.lt.s32.totalorder %s599, 63
      %s601 = scalar_select %p600, %s599, 63
      %s602 = smul.addr %s601, 8
      %s603 = scalar_lea.vmem %s3, %s602
      // Predicated region
      $region33: #{alexnet_forward.8} parent=31 // pred_check
        %p604 = pneg %p100
      $region34: #{alexnet_forward.8} parent=31 // pred_check_branch
        %606 = sbr.rel (%p604) target = $region36
      $region35: #{alexnet_forward.8} parent=31 // pred_region
        %s607 = smul.u32 32, %s14
      $region36: #{alexnet_forward.8} parent=31 // pred_fallthru
        _
    $region32: #{alexnet_forward.8} parent=5 // pred_fallthru
      _
    %p608 = scmp.le.s32.totalorder 2, %s9
    // Predicated region
    $region37: #{alexnet_forward.8} parent=5 // pred_check
      %p609 = pneg %p608
    $region38: #{alexnet_forward.8} parent=5 // pred_check_branch
      %611 = sbr.rel (%p609) target = $region40
    $region39: #{alexnet_forward.8} parent=5 // pred_region
      %s612 = ssub.s32 %s9, 2
      // Predicated region
      $region41: #{alexnet_forward.8} parent=39 // pred_check
        %p613 = pneg %p106
      $region42: #{alexnet_forward.8} parent=39 // pred_check_branch
        %615 = sbr.rel (%p613) target = $region44
      $region43: #{alexnet_forward.8} parent=39 // pred_region
        %s616 = smul.u32 32, %s15
        %p617 = scmp.lt.s32.totalorder %s616, 63
        %s618 = scalar_select %p617, %s616, 63
        %s619 = smul.addr %s618, 8
        %s620 = scalar_lea.vmem %s3, %s619
      $region44: #{alexnet_forward.8} parent=39 // pred_fallthru
        _
    $region40: #{alexnet_forward.8} parent=5 // pred_fallthru
      _
  $region6: #{alexnet_forward.8} parent=0 // loop_footer
    %s13 = sadd.s32 1, %s9
  $region7: #{alexnet_forward.8} parent=0 // loop_footer_branch
    %8 = sbr.rel target = $region3
  $region8: #{alexnet_forward.8} parent=0 // loop_exit
    _

// kernel: mul.10
$region0: #{mul.10}
  #allocation0 [shape = 's32[1]{0}', space=sflag, size = 0x4, scoped, tag = 'scoped memory for mul.10']
  %s0 = inlined_call_operand.vmem [shape: f32[2,8,8,16], index: 0, kind: input, shape index: {}, may-alias: {0,1}]
  %s1 = inlined_call_operand.vmem [shape: f32[2,8,8,16], index: 1, kind: input, shape index: {}, may-alias: {0,1}]
  %s2 = inlined_call_operand.vmem [shape: f32[2,8,8,16], index: 2, kind: output, shape index: {}]
  %v3 = vld [vmem:[%s0] sm:$0xff]
  %v4 = vld [vmem:[%s1] sm:$0xff]
  %5 = xla_tuple %v3, %v4
  %6 = xla_tuple %5
  %v7 = vmul.f32 %v3, %v4
  %8 = xla_tuple %v7
  %9 = vst [vmem:[%s2] sm:$0xff] %v7
  %s10 = scalar_lea.vmem %s0, 64
  %v11 = vld [vmem:[%s10] sm:$0xff]
  %s12 = scalar_lea.vmem %s1, 64
  %v13 = vld [vmem:[%s12] sm:$0xff]
  %14 = xla_tuple %v11, %v13
  %15 = xla_tuple %14
  %v16 = vmul.f32 %v11, %v13
  %17 = xla_tuple %v16
  %s18 = scalar_lea.vmem %s2, 64
  %19 = vst [vmem:[%s18] sm:$0xff] %v16
  %s20 = scalar_lea.vmem %s0, 8
  %v21 = vld [vmem:[%s20] sm:$0xff]
  %s22 = scalar_lea.vmem %s1, 8
  %v23 = vld [vmem:[%s22] sm:$0xff]
  %24 = xla_tuple %v21, %v23
  %25 = xla_tuple %24
  %v26 = vmul.f32 %v21, %v23
  %27 = xla_tuple %v26
  %s28 = scalar_lea.vmem %s2, 8
  %29 = vst [vmem:[%s28] sm:$0xff] %v26
  %s30 = scalar_lea.vmem %s0, 72
  %v31 = vld [vmem:[%s30] sm:$0xff]
  %s32 = scalar_lea.vmem %s1, 72
  %v33 = vld [vmem:[%s32] sm:$0xff]
  %34 = xla_tuple %v31, %v33
  %35 = xla_tuple %34
  %v36 = vmul.f32 %v31, %v33
  %37 = xla_tuple %v36
  %s38 = scalar_lea.vmem %s2, 72
  %39 = vst [vmem:[%s38] sm:$0xff] %v36
  %s40 = scalar_lea.vmem %s0, 16
  %v41 = vld [vmem:[%s40] sm:$0xff]
  %s42 = scalar_lea.vmem %s1, 16
  %v43 = vld [vmem:[%s42] sm:$0xff]
  %44 = xla_tuple %v41, %v43
  %45 = xla_tuple %44
  %v46 = vmul.f32 %v41, %v43
  %47 = xla_tuple %v46
  %s48 = scalar_lea.vmem %s2, 16
  %49 = vst [vmem:[%s48] sm:$0xff] %v46
  %s50 = scalar_lea.vmem %s0, 80
  %v51 = vld [vmem:[%s50] sm:$0xff]
  %s52 = scalar_lea.vmem %s1, 80
  %v53 = vld [vmem:[%s52] sm:$0xff]
  %54 = xla_tuple %v51, %v53
  %55 = xla_tuple %54
  %v56 = vmul.f32 %v51, %v53
  %57 = xla_tuple %v56
  %s58 = scalar_lea.vmem %s2, 80
  %59 = vst [vmem:[%s58] sm:$0xff] %v56
  %s60 = scalar_lea.vmem %s0, 24
  %v61 = vld [vmem:[%s60] sm:$0xff]
  %s62 = scalar_lea.vmem %s1, 24
  %v63 = vld [vmem:[%s62] sm:$0xff]
  %64 = xla_tuple %v61, %v63
  %65 = xla_tuple %64
  %v66 = vmul.f32 %v61, %v63
  %67 = xla_tuple %v66
  %s68 = scalar_lea.vmem %s2, 24
  %69 = vst [vmem:[%s68] sm:$0xff] %v66
  %s70 = scalar_lea.vmem %s0, 88
  %v71 = vld [vmem:[%s70] sm:$0xff]
  %s72 = scalar_lea.vmem %s1, 88
  %v73 = vld [vmem:[%s72] sm:$0xff]
  %74 = xla_tuple %v71, %v73
  %75 = xla_tuple %74
  %v76 = vmul.f32 %v71, %v73
  %77 = xla_tuple %v76
  %s78 = scalar_lea.vmem %s2, 88
  %79 = vst [vmem:[%s78] sm:$0xff] %v76
  %s80 = scalar_lea.vmem %s0, 32
  %v81 = vld [vmem:[%s80] sm:$0xff]
  %s82 = scalar_lea.vmem %s1, 32
  %v83 = vld [vmem:[%s82] sm:$0xff]
  %84 = xla_tuple %v81, %v83
  %85 = xla_tuple %84
  %v86 = vmul.f32 %v81, %v83
  %87 = xla_tuple %v86
  %s88 = scalar_lea.vmem %s2, 32
  %89 = vst [vmem:[%s88] sm:$0xff] %v86
  %s90 = scalar_lea.vmem %s0, 96
  %v91 = vld [vmem:[%s90] sm:$0xff]
  %s92 = scalar_lea.vmem %s1, 96
  %v93 = vld [vmem:[%s92] sm:$0xff]
  %94 = xla_tuple %v91, %v93
  %95 = xla_tuple %94
  %v96 = vmul.f32 %v91, %v93
  %97 = xla_tuple %v96
  %s98 = scalar_lea.vmem %s2, 96
  %99 = vst [vmem:[%s98] sm:$0xff] %v96
  %s100 = scalar_lea.vmem %s0, 40
  %v101 = vld [vmem:[%s100] sm:$0xff]
  %s102 = scalar_lea.vmem %s1, 40
  %v103 = vld [vmem:[%s102] sm:$0xff]
  %104 = xla_tuple %v101, %v103
  %105 = xla_tuple %104
  %v106 = vmul.f32 %v101, %v103
  %107 = xla_tuple %v106
  %s108 = scalar_lea.vmem %s2, 40
  %109 = vst [vmem:[%s108] sm:$0xff] %v106
  %s110 = scalar_lea.vmem %s0, 104
  %v111 = vld [vmem:[%s110] sm:$0xff]
  %s112 = scalar_lea.vmem %s1, 104
  %v113 = vld [vmem:[%s112] sm:$0xff]
  %114 = xla_tuple %v111, %v113
  %115 = xla_tuple %114
  %v116 = vmul.f32 %v111, %v113
  %117 = xla_tuple %v116
  %s118 = scalar_lea.vmem %s2, 104
  %119 = vst [vmem:[%s118] sm:$0xff] %v116
  %s120 = scalar_lea.vmem %s0, 48
  %v121 = vld [vmem:[%s120] sm:$0xff]
  %s122 = scalar_lea.vmem %s1, 48
  %v123 = vld [vmem:[%s122] sm:$0xff]
  %124 = xla_tuple %v121, %v123
  %125 = xla_tuple %124
  %v126 = vmul.f32 %v121, %v123
  %127 = xla_tuple %v126
  %s128 = scalar_lea.vmem %s2, 48
  %129 = vst [vmem:[%s128] sm:$0xff] %v126
  %s130 = scalar_lea.vmem %s0, 112
  %v131 = vld [vmem:[%s130] sm:$0xff]
  %s132 = scalar_lea.vmem %s1, 112
  %v133 = vld [vmem:[%s132] sm:$0xff]
  %134 = xla_tuple %v131, %v133
  %135 = xla_tuple %134
  %v136 = vmul.f32 %v131, %v133
  %137 = xla_tuple %v136
  %s138 = scalar_lea.vmem %s2, 112
  %139 = vst [vmem:[%s138] sm:$0xff] %v136
  %s140 = scalar_lea.vmem %s0, 56
  %v141 = vld [vmem:[%s140] sm:$0xff]
  %s142 = scalar_lea.vmem %s1, 56
  %v143 = vld [vmem:[%s142] sm:$0xff]
  %144 = xla_tuple %v141, %v143
  %145 = xla_tuple %144
  %v146 = vmul.f32 %v141, %v143
  %147 = xla_tuple %v146
  %s148 = scalar_lea.vmem %s2, 56
  %149 = vst [vmem:[%s148] sm:$0xff] %v146
  %s150 = scalar_lea.vmem %s0, 120
  %v151 = vld [vmem:[%s150] sm:$0xff]
  %s152 = scalar_lea.vmem %s1, 120
  %v153 = vld [vmem:[%s152] sm:$0xff]
  %154 = xla_tuple %v151, %v153
  %155 = xla_tuple %154
  %v156 = vmul.f32 %v151, %v153
  %157 = xla_tuple %v156
  %s158 = scalar_lea.vmem %s2, 120
  %159 = vst [vmem:[%s158] sm:$0xff] %v156

// kernel: alexnet_forward.9
$region0: #{alexnet_forward.9}
  #allocation0 [shape = 'u32[]', space=smem, size = 0x4, offset = 0x4, fixed_abs, tag = 'smem constant byte address 0x4 - core index']
  #allocation1 [shape = 'u32[144,128]{1,0:T(1,128)}', space=vmem, size = 0x12000, scoped, tag = 'internal scratch']
  %s0 = inlined_call_operand.vmem [shape: bf16[128,128], index: 0, kind: input, shape index: {}]
  %s1 = inlined_call_operand.vmem [shape: bf16[128,128], index: 1, kind: input, shape index: {}]
  %s2 = inlined_call_operand.vmem [shape: f32[1,128], index: 2, kind: input, shape index: {}]
  %s3 = inlined_call_operand.vmem [shape: f32[128,128], index: 3, kind: output, shape index: {}]
  %s4 = sld [smem:[#allocation0]]
  $region22: #{alexnet_forward.9} parent=0
    _
  %s6 = ssub.s32 1, %s4
  %s7 = scalar_select 0, %s6, %s4
  // Predicated region
  $region2: #{alexnet_forward.9} parent=0 // pred_check
    _
  $region3: #{alexnet_forward.9} parent=0 // pred_check_branch
    %9 = sbr.rel (0) target = $region5
  $region4: #{alexnet_forward.9} parent=0 // pred_region
    _
  $region5: #{alexnet_forward.9} parent=0 // pred_fallthru
    _
  // Predicated region
  $region6: #{alexnet_forward.9} parent=0 // pred_check
    _
  $region7: #{alexnet_forward.9} parent=0 // pred_check_branch
    %11 = sbr.rel (0) target = $region9
  $region8: #{alexnet_forward.9} parent=0 // pred_region
    _
  $region9: #{alexnet_forward.9} parent=0 // pred_fallthru
    _
  // Predicated region
  $region10: #{alexnet_forward.9} parent=0 // pred_check
    _
  $region11: #{alexnet_forward.9} parent=0 // pred_check_branch
    %13 = sbr.rel (0) target = $region13
  $region12: #{alexnet_forward.9} parent=0 // pred_region
    _
  $region13: #{alexnet_forward.9} parent=0 // pred_fallthru
    _
  %v15 = vld [vmem:[%s0] sm:$0xf]
  %v16 = vld [vmem:[%s0 + $0x4] sm:$0xf]
  %v17 = vld [vmem:[%s0 + $0x8] sm:$0xf]
  %v18 = vld [vmem:[%s0 + $0xc] sm:$0xf]
  %v19 = vld [vmem:[%s0 + $0x10] sm:$0xf]
  %v20 = vld [vmem:[%s0 + $0x14] sm:$0xf]
  %v21 = vld [vmem:[%s0 + $0x18] sm:$0xf]
  %v22 = vld [vmem:[%s0 + $0x1c] sm:$0xf]
  %v23 = vld [vmem:[%s0 + $0x20] sm:$0xf]
  %v24 = vld [vmem:[%s0 + $0x24] sm:$0xf]
  %v25 = vld [vmem:[%s0 + $0x28] sm:$0xf]
  %v26 = vld [vmem:[%s0 + $0x2c] sm:$0xf]
  %v27 = vld [vmem:[%s0 + $0x30] sm:$0xf]
  %v28 = vld [vmem:[%s0 + $0x34] sm:$0xf]
  %v29 = vld [vmem:[%s0 + $0x38] sm:$0xf]
  %v30 = vld [vmem:[%s0 + $0x3c] sm:$0xf]
  %v31 = vld [vmem:[%s1] sm:$0xf]
  %v32 = vld [vmem:[%s1 + $0x4] sm:$0xf]
  %v33 = vld [vmem:[%s1 + $0x8] sm:$0xf]
  %v34 = vld [vmem:[%s1 + $0xc] sm:$0xf]
  %v35 = vld [vmem:[%s1 + $0x10] sm:$0xf]
  %v36 = vld [vmem:[%s1 + $0x14] sm:$0xf]
  %v37 = vld [vmem:[%s1 + $0x18] sm:$0xf]
  %v38 = vld [vmem:[%s1 + $0x1c] sm:$0xf]
  %v39 = vld [vmem:[%s1 + $0x20] sm:$0xf]
  %v40 = vld [vmem:[%s1 + $0x24] sm:$0xf]
  %v41 = vld [vmem:[%s1 + $0x28] sm:$0xf]
  %v42 = vld [vmem:[%s1 + $0x2c] sm:$0xf]
  %v43 = vld [vmem:[%s1 + $0x30] sm:$0xf]
  %v44 = vld [vmem:[%s1 + $0x34] sm:$0xf]
  %v45 = vld [vmem:[%s1 + $0x38] sm:$0xf]
  %v46 = vld [vmem:[%s1 + $0x3c] sm:$0xf]
  %v47 = vld [vmem:[%s2] sm:$0x1]
  %v49 = vlaneseq
  %v50 = vshrl.u32 %v49, 7
  %v51 = vsub.s32 0, %v50
  %v52 = vrot.slane %v47, %v51
  %v70 = vunpack.c.l.b16 %v15
  %v71 = vunpack.c.l.b16 %v16
  %v72 = vunpack.c.l.b16 %v17
  %v73 = vunpack.c.l.b16 %v18
  %v74 = vunpack.c.l.b16 %v19
  %v75 = vunpack.c.l.b16 %v20
  %v76 = vunpack.c.l.b16 %v21
  %v77 = vunpack.c.l.b16 %v22
  %v78 = vunpack.c.l.b16 %v23
  %v79 = vunpack.c.l.b16 %v24
  %v80 = vunpack.c.l.b16 %v25
  %v81 = vunpack.c.l.b16 %v26
  %v82 = vunpack.c.l.b16 %v27
  %v83 = vunpack.c.l.b16 %v28
  %v84 = vunpack.c.l.b16 %v29
  %v85 = vunpack.c.l.b16 %v30
  %v86 = vpack.c.b16 %v71, %v70
  %v87 = vpack.c.b16 %v73, %v72
  %v88 = vpack.c.b16 %v75, %v74
  %v89 = vpack.c.b16 %v77, %v76
  %v90 = vpack.c.b16 %v79, %v78
  %v91 = vpack.c.b16 %v81, %v80
  %v92 = vpack.c.b16 %v83, %v82
  %v93 = vpack.c.b16 %v85, %v84
  %v118 = vunpack.c.l.b16 %v31
  %v119 = vunpack.c.l.b16 %v32
  %v120 = vunpack.c.l.b16 %v33
  %v121 = vunpack.c.l.b16 %v34
  %v122 = vunpack.c.l.b16 %v35
  %v123 = vunpack.c.l.b16 %v36
  %v124 = vunpack.c.l.b16 %v37
  %v125 = vunpack.c.l.b16 %v38
  %v126 = vunpack.c.l.b16 %v39
  %v127 = vunpack.c.l.b16 %v40
  %v128 = vunpack.c.l.b16 %v41
  %v129 = vunpack.c.l.b16 %v42
  %v130 = vunpack.c.l.b16 %v43
  %v131 = vunpack.c.l.b16 %v44
  %v132 = vunpack.c.l.b16 %v45
  %v133 = vunpack.c.l.b16 %v46
  %v134 = vpack.c.b16 %v119, %v118
  %v135 = vpack.c.b16 %v121, %v120
  %v136 = vpack.c.b16 %v123, %v122
  %v137 = vpack.c.b16 %v125, %v124
  %v138 = vpack.c.b16 %v127, %v126
  %v139 = vpack.c.b16 %v129, %v128
  %v140 = vpack.c.b16 %v131, %v130
  %v141 = vpack.c.b16 %v133, %v132
  %150 = vmatprep.subr.bf16.mxu0 0
  %151 = vmatpush1.bf16.msra.mxu0 %v134
  %152 = vmatprep.subr.bf16.mxu0 0
  %153 = vmatpush1.bf16.msra.mxu0 %v135
  %154 = vmatprep.subr.bf16.mxu0 0
  %155 = vmatpush1.bf16.msra.mxu0 %v136
  %156 = vmatprep.subr.bf16.mxu0 0
  %157 = vmatpush1.bf16.msra.mxu0 %v137
  %158 = vmatprep.subr.bf16.mxu0 0
  %159 = vmatpush1.bf16.msra.mxu0 %v138
  %160 = vmatprep.subr.bf16.mxu0 0
  %161 = vmatpush1.bf16.msra.mxu0 %v139
  %162 = vmatprep.subr.bf16.mxu0 0
  %163 = vmatpush1.bf16.msra.mxu0 %v140
  %164 = vmatprep.subr.bf16.mxu0 0
  %165 = vmatpush1.bf16.msra.mxu0 %v141
  %166 = vmatprep.subr.bf16.mxu0 0
  %167 = vmatpush1.bf16.msra.mxu0 0
  %168 = vmatprep.subr.bf16.mxu0 0
  %169 = vmatpush1.bf16.msra.mxu0 0
  %170 = vmatprep.subr.bf16.mxu0 0
  %171 = vmatpush1.bf16.msra.mxu0 0
  %172 = vmatprep.subr.bf16.mxu0 0
  %173 = vmatpush1.bf16.msra.mxu0 0
  %174 = vmatprep.subr.bf16.mxu0 0
  %175 = vmatpush1.bf16.msra.mxu0 0
  %176 = vmatprep.subr.bf16.mxu0 0
  %177 = vmatpush1.bf16.msra.mxu0 0
  %178 = vmatprep.subr.bf16.mxu0 0
  %179 = vmatpush1.bf16.msra.mxu0 0
  %180 = vmatprep.subr.bf16.mxu0 0
  %181 = vmatpush1.bf16.msra.mxu0 0
  %182 = vmatprep.mubr.bf16.mxu0 0
  %183 = vmatmul.mubr.bf16.gmra.mrb[0].mxu0 %v86
  %v184 = vpop.f32.mrb[0].mxu0
  %v185 = vadd.f32 %v52, %v184
  %v186 = vpop.f32.mrb[0].mxu0
  %v187 = vpop.f32.mrb[0].mxu0
  %v188 = vadd.f32 %v52, %v187
  %v189 = vpop.f32.mrb[0].mxu0
  %190 = vmatprep.mubr.bf16.mxu0 0
  %191 = vmatmul.mubr.bf16.gmra.mrb[0].mxu0 %v87
  %v192 = vpop.f32.mrb[0].mxu0
  %v193 = vadd.f32 %v52, %v192
  %v194 = vpop.f32.mrb[0].mxu0
  %v195 = vpop.f32.mrb[0].mxu0
  %v196 = vadd.f32 %v52, %v195
  %v197 = vpop.f32.mrb[0].mxu0
  %198 = vmatprep.mubr.bf16.mxu0 0
  %199 = vmatmul.mubr.bf16.gmra.mrb[0].mxu0 %v88
  %v200 = vpop.f32.mrb[0].mxu0
  %v201 = vadd.f32 %v52, %v200
  %v202 = vpop.f32.mrb[0].mxu0
  %v203 = vpop.f32.mrb[0].mxu0
  %v204 = vadd.f32 %v52, %v203
  %v205 = vpop.f32.mrb[0].mxu0
  %206 = vmatprep.mubr.bf16.mxu0 0
  %207 = vmatmul.mubr.bf16.gmra.mrb[0].mxu0 %v89
  %v208 = vpop.f32.mrb[0].mxu0
  %v209 = vadd.f32 %v52, %v208
  %v210 = vpop.f32.mrb[0].mxu0
  %v211 = vpop.f32.mrb[0].mxu0
  %v212 = vadd.f32 %v52, %v211
  %v213 = vpop.f32.mrb[0].mxu0
  %214 = vmatprep.mubr.bf16.mxu0 0
  %215 = vmatmul.mubr.bf16.gmra.mrb[0].mxu0 %v90
  %v216 = vpop.f32.mrb[0].mxu0
  %v217 = vadd.f32 %v52, %v216
  %v218 = vpop.f32.mrb[0].mxu0
  %v219 = vpop.f32.mrb[0].mxu0
  %v220 = vadd.f32 %v52, %v219
  %v221 = vpop.f32.mrb[0].mxu0
  %222 = vmatprep.mubr.bf16.mxu0 0
  %223 = vmatmul.mubr.bf16.gmra.mrb[0].mxu0 %v91
  %v224 = vpop.f32.mrb[0].mxu0
  %v225 = vadd.f32 %v52, %v224
  %v226 = vpop.f32.mrb[0].mxu0
  %v227 = vpop.f32.mrb[0].mxu0
  %v228 = vadd.f32 %v52, %v227
  %v229 = vpop.f32.mrb[0].mxu0
  %230 = vmatprep.mubr.bf16.mxu0 0
  %231 = vmatmul.mubr.bf16.gmra.mrb[0].mxu0 %v92
  %v232 = vpop.f32.mrb[0].mxu0
  %v233 = vadd.f32 %v52, %v232
  %v234 = vpop.f32.mrb[0].mxu0
  %v235 = vpop.f32.mrb[0].mxu0
  %v236 = vadd.f32 %v52, %v235
  %v237 = vpop.f32.mrb[0].mxu0
  %238 = vmatprep.mubr.bf16.mxu0 0
  %239 = vmatmul.mubr.bf16.gmra.mrb[0].mxu0 %v93
  %v240 = vpop.f32.mrb[0].mxu0
  %v241 = vadd.f32 %v52, %v240
  %v242 = vpop.f32.mrb[0].mxu0
  %v243 = vpop.f32.mrb[0].mxu0
  %v244 = vadd.f32 %v52, %v243
  %v245 = vpop.f32.mrb[0].mxu0
  %246 = vdwg.mxu0
  %v247 = vmax.f32 %v185, 0.0
  %v248 = vmax.f32 %v188, 0.0
  %v249 = vmax.f32 %v193, 0.0
  %v250 = vmax.f32 %v196, 0.0
  %v251 = vmax.f32 %v201, 0.0
  %v252 = vmax.f32 %v204, 0.0
  %v253 = vmax.f32 %v209, 0.0
  %v254 = vmax.f32 %v212, 0.0
  %v255 = vmax.f32 %v217, 0.0
  %v256 = vmax.f32 %v220, 0.0
  %v257 = vmax.f32 %v225, 0.0
  %v258 = vmax.f32 %v228, 0.0
  %v259 = vmax.f32 %v233, 0.0
  %v260 = vmax.f32 %v236, 0.0
  %v261 = vmax.f32 %v241, 0.0
  %v262 = vmax.f32 %v244, 0.0
  %263 = vst [vmem:[%s3] sm:$0xff] %v247
  %264 = vst [vmem:[%s3 + $0x8] sm:$0xff] %v248
  %265 = vst [vmem:[%s3 + $0x10] sm:$0xff] %v249
  %266 = vst [vmem:[%s3 + $0x18] sm:$0xff] %v250
  %267 = vst [vmem:[%s3 + $0x20] sm:$0xff] %v251
  %268 = vst [vmem:[%s3 + $0x28] sm:$0xff] %v252
  %269 = vst [vmem:[%s3 + $0x30] sm:$0xff] %v253
  %270 = vst [vmem:[%s3 + $0x38] sm:$0xff] %v254
  %271 = vst [vmem:[%s3 + $0x40] sm:$0xff] %v255
  %272 = vst [vmem:[%s3 + $0x48] sm:$0xff] %v256
  %273 = vst [vmem:[%s3 + $0x50] sm:$0xff] %v257
  %274 = vst [vmem:[%s3 + $0x58] sm:$0xff] %v258
  %275 = vst [vmem:[%s3 + $0x60] sm:$0xff] %v259
  %276 = vst [vmem:[%s3 + $0x68] sm:$0xff] %v260
  %277 = vst [vmem:[%s3 + $0x70] sm:$0xff] %v261
  %278 = vst [vmem:[%s3 + $0x78] sm:$0xff] %v262
  // Predicated region
  $region14: #{alexnet_forward.9} parent=0 // pred_check
    _
  $region15: #{alexnet_forward.9} parent=0 // pred_check_branch
    %280 = sbr.rel (0) target = $region17
  $region16: #{alexnet_forward.9} parent=0 // pred_region
    _
  $region17: #{alexnet_forward.9} parent=0 // pred_fallthru
    _
  // Predicated region
  $region18: #{alexnet_forward.9} parent=0 // pred_check
    _
  $region19: #{alexnet_forward.9} parent=0 // pred_check_branch
    %282 = sbr.rel (0) target = $region21
  $region20: #{alexnet_forward.9} parent=0 // pred_region
    _
  $region21: #{alexnet_forward.9} parent=0 // pred_fallthru
    _

// kernel: alexnet_forward.10
$region0: #{alexnet_forward.10}
  #allocation0 [shape = 'u32[]', space=smem, size = 0x4, offset = 0x4, fixed_abs, tag = 'smem constant byte address 0x4 - core index']
  #allocation1 [shape = 'u32[144,128]{1,0:T(1,128)}', space=vmem, size = 0x12000, scoped, tag = 'internal scratch']
  %s0 = inlined_call_operand.vmem [shape: bf16[32,256], index: 0, kind: input, shape index: {}]
  %s1 = inlined_call_operand.vmem [shape: bf16[256,128], index: 1, kind: input, shape index: {}]
  %s2 = inlined_call_operand.vmem [shape: f32[1,128], index: 2, kind: input, shape index: {}]
  %s3 = inlined_call_operand.vmem [shape: f32[32,128], index: 3, kind: output, shape index: {}]
  %s4 = sld [smem:[#allocation0]]
  $region22: #{alexnet_forward.10} parent=0
    _
  %s6 = ssub.s32 1, %s4
  %s7 = scalar_select 0, %s6, %s4
  // Predicated region
  $region2: #{alexnet_forward.10} parent=0 // pred_check
    _
  $region3: #{alexnet_forward.10} parent=0 // pred_check_branch
    %9 = sbr.rel (0) target = $region5
  $region4: #{alexnet_forward.10} parent=0 // pred_region
    _
  $region5: #{alexnet_forward.10} parent=0 // pred_fallthru
    _
  // Predicated region
  $region6: #{alexnet_forward.10} parent=0 // pred_check
    _
  $region7: #{alexnet_forward.10} parent=0 // pred_check_branch
    %11 = sbr.rel (0) target = $region9
  $region8: #{alexnet_forward.10} parent=0 // pred_region
    _
  $region9: #{alexnet_forward.10} parent=0 // pred_fallthru
    _
  // Predicated region
  $region10: #{alexnet_forward.10} parent=0 // pred_check
    _
  $region11: #{alexnet_forward.10} parent=0 // pred_check_branch
    %13 = sbr.rel (0) target = $region13
  $region12: #{alexnet_forward.10} parent=0 // pred_region
    _
  $region13: #{alexnet_forward.10} parent=0 // pred_fallthru
    _
  %v15 = vld [vmem:[%s0] sm:$0xff]
  %v16 = vld [vmem:[%s0 + $0x8] sm:$0xff]
  %v17 = vld [vmem:[%s0 + $0x10] sm:$0xff]
  %v18 = vld [vmem:[%s0 + $0x18] sm:$0xff]
  %v19 = vld [vmem:[%s1] sm:$0xf]
  %v20 = vld [vmem:[%s1 + $0x4] sm:$0xf]
  %v21 = vld [vmem:[%s1 + $0x8] sm:$0xf]
  %v22 = vld [vmem:[%s1 + $0xc] sm:$0xf]
  %v23 = vld [vmem:[%s1 + $0x10] sm:$0xf]
  %v24 = vld [vmem:[%s1 + $0x14] sm:$0xf]
  %v25 = vld [vmem:[%s1 + $0x18] sm:$0xf]
  %v26 = vld [vmem:[%s1 + $0x1c] sm:$0xf]
  %v27 = vld [vmem:[%s1 + $0x20] sm:$0xf]
  %v28 = vld [vmem:[%s1 + $0x24] sm:$0xf]
  %v29 = vld [vmem:[%s1 + $0x28] sm:$0xf]
  %v30 = vld [vmem:[%s1 + $0x2c] sm:$0xf]
  %v31 = vld [vmem:[%s1 + $0x30] sm:$0xf]
  %v32 = vld [vmem:[%s1 + $0x34] sm:$0xf]
  %v33 = vld [vmem:[%s1 + $0x38] sm:$0xf]
  %v34 = vld [vmem:[%s1 + $0x3c] sm:$0xf]
  %v35 = vld [vmem:[%s1 + $0x40] sm:$0xf]
  %v36 = vld [vmem:[%s1 + $0x44] sm:$0xf]
  %v37 = vld [vmem:[%s1 + $0x48] sm:$0xf]
  %v38 = vld [vmem:[%s1 + $0x4c] sm:$0xf]
  %v39 = vld [vmem:[%s1 + $0x50] sm:$0xf]
  %v40 = vld [vmem:[%s1 + $0x54] sm:$0xf]
  %v41 = vld [vmem:[%s1 + $0x58] sm:$0xf]
  %v42 = vld [vmem:[%s1 + $0x5c] sm:$0xf]
  %v43 = vld [vmem:[%s1 + $0x60] sm:$0xf]
  %v44 = vld [vmem:[%s1 + $0x64] sm:$0xf]
  %v45 = vld [vmem:[%s1 + $0x68] sm:$0xf]
  %v46 = vld [vmem:[%s1 + $0x6c] sm:$0xf]
  %v47 = vld [vmem:[%s1 + $0x70] sm:$0xf]
  %v48 = vld [vmem:[%s1 + $0x74] sm:$0xf]
  %v49 = vld [vmem:[%s1 + $0x78] sm:$0xf]
  %v50 = vld [vmem:[%s1 + $0x7c] sm:$0xf]
  %v51 = vld [vmem:[%s2] sm:$0x1]
  %v53 = vlaneseq
  %v54 = vshrl.u32 %v53, 7
  %v55 = vsub.s32 0, %v54
  %v56 = vrot.slane %v51, %v55
  %v62 = vunpack.c.l.b16 %v15
  %v63 = vunpack.c.h.b16 %v15
  %v64 = vunpack.c.l.b16 %v16
  %v65 = vunpack.c.h.b16 %v16
  %v66 = vunpack.c.l.b16 %v17
  %v67 = vunpack.c.h.b16 %v17
  %v68 = vunpack.c.l.b16 %v18
  %v69 = vunpack.c.h.b16 %v18
  %v70 = vpack.c.b16 %v64, %v62
  %v71 = vpack.c.b16 %v65, %v63
  %v72 = vpack.c.b16 %v68, %v66
  %v73 = vpack.c.b16 %v69, %v67
  %v110 = vunpack.c.l.b16 %v19
  %v111 = vunpack.c.l.b16 %v20
  %v112 = vunpack.c.l.b16 %v21
  %v113 = vunpack.c.l.b16 %v22
  %v114 = vunpack.c.l.b16 %v23
  %v115 = vunpack.c.l.b16 %v24
  %v116 = vunpack.c.l.b16 %v25
  %v117 = vunpack.c.l.b16 %v26
  %v118 = vunpack.c.l.b16 %v27
  %v119 = vunpack.c.l.b16 %v28
  %v120 = vunpack.c.l.b16 %v29
  %v121 = vunpack.c.l.b16 %v30
  %v122 = vunpack.c.l.b16 %v31
  %v123 = vunpack.c.l.b16 %v32
  %v124 = vunpack.c.l.b16 %v33
  %v125 = vunpack.c.l.b16 %v34
  %v126 = vunpack.c.l.b16 %v35
  %v127 = vunpack.c.l.b16 %v36
  %v128 = vunpack.c.l.b16 %v37
  %v129 = vunpack.c.l.b16 %v38
  %v130 = vunpack.c.l.b16 %v39
  %v131 = vunpack.c.l.b16 %v40
  %v132 = vunpack.c.l.b16 %v41
  %v133 = vunpack.c.l.b16 %v42
  %v134 = vunpack.c.l.b16 %v43
  %v135 = vunpack.c.l.b16 %v44
  %v136 = vunpack.c.l.b16 %v45
  %v137 = vunpack.c.l.b16 %v46
  %v138 = vunpack.c.l.b16 %v47
  %v139 = vunpack.c.l.b16 %v48
  %v140 = vunpack.c.l.b16 %v49
  %v141 = vunpack.c.l.b16 %v50
  %v142 = vpack.c.b16 %v111, %v110
  %v143 = vpack.c.b16 %v113, %v112
  %v144 = vpack.c.b16 %v115, %v114
  %v145 = vpack.c.b16 %v117, %v116
  %v146 = vpack.c.b16 %v119, %v118
  %v147 = vpack.c.b16 %v121, %v120
  %v148 = vpack.c.b16 %v123, %v122
  %v149 = vpack.c.b16 %v125, %v124
  %v150 = vpack.c.b16 %v127, %v126
  %v151 = vpack.c.b16 %v129, %v128
  %v152 = vpack.c.b16 %v131, %v130
  %v153 = vpack.c.b16 %v133, %v132
  %v154 = vpack.c.b16 %v135, %v134
  %v155 = vpack.c.b16 %v137, %v136
  %v156 = vpack.c.b16 %v139, %v138
  %v157 = vpack.c.b16 %v141, %v140
  %174 = vmatprep.subr.bf16.mxu0 0
  %175 = vmatpush1.bf16.msra.mxu0 %v142
  %176 = vmatprep.subr.bf16.mxu0 0
  %177 = vmatpush1.bf16.msra.mxu0 %v143
  %178 = vmatprep.subr.bf16.mxu0 0
  %179 = vmatpush1.bf16.msra.mxu0 %v144
  %180 = vmatprep.subr.bf16.mxu0 0
  %181 = vmatpush1.bf16.msra.mxu0 %v145
  %182 = vmatprep.subr.bf16.mxu0 0
  %183 = vmatpush1.bf16.msra.mxu0 %v146
  %184 = vmatprep.subr.bf16.mxu0 0
  %185 = vmatpush1.bf16.msra.mxu0 %v147
  %186 = vmatprep.subr.bf16.mxu0 0
  %187 = vmatpush1.bf16.msra.mxu0 %v148
  %188 = vmatprep.subr.bf16.mxu0 0
  %189 = vmatpush1.bf16.msra.mxu0 %v149
  %190 = vmatprep.subr.bf16.mxu0 0
  %191 = vmatpush1.bf16.msra.mxu0 %v150
  %192 = vmatprep.subr.bf16.mxu0 0
  %193 = vmatpush1.bf16.msra.mxu0 %v151
  %194 = vmatprep.subr.bf16.mxu0 0
  %195 = vmatpush1.bf16.msra.mxu0 %v152
  %196 = vmatprep.subr.bf16.mxu0 0
  %197 = vmatpush1.bf16.msra.mxu0 %v153
  %198 = vmatprep.subr.bf16.mxu0 0
  %199 = vmatpush1.bf16.msra.mxu0 %v154
  %200 = vmatprep.subr.bf16.mxu0 0
  %201 = vmatpush1.bf16.msra.mxu0 %v155
  %202 = vmatprep.subr.bf16.mxu0 0
  %203 = vmatpush1.bf16.msra.mxu0 %v156
  %204 = vmatprep.subr.bf16.mxu0 0
  %205 = vmatpush1.bf16.msra.mxu0 %v157
  %206 = vmatprep.mubr.bf16.mxu0 %v71
  %207 = vmatmul.mubr.bf16.gmra.mrb[0].mxu0 %v70
  %v208 = vpop.f32.mrb[0].mxu0
  %v209 = vadd.f32 %v56, %v208
  %v210 = vpop.f32.mrb[0].mxu0
  %v211 = vpop.f32.mrb[0].mxu0
  %v212 = vadd.f32 %v56, %v211
  %v213 = vpop.f32.mrb[0].mxu0
  %214 = vmatprep.mubr.bf16.mxu0 %v73
  %215 = vmatmul.mubr.bf16.gmra.mrb[0].mxu0 %v72
  %v216 = vpop.f32.mrb[0].mxu0
  %v217 = vadd.f32 %v56, %v216
  %v218 = vpop.f32.mrb[0].mxu0
  %v219 = vpop.f32.mrb[0].mxu0
  %v220 = vadd.f32 %v56, %v219
  %v221 = vpop.f32.mrb[0].mxu0
  %222 = vdwg.mxu0
  %v223 = vmax.f32 %v209, 0.0
  %v224 = vmax.f32 %v212, 0.0
  %v225 = vmax.f32 %v217, 0.0
  %v226 = vmax.f32 %v220, 0.0
  %227 = vst [vmem:[%s3] sm:$0xff] %v223
  %228 = vst [vmem:[%s3 + $0x8] sm:$0xff] %v224
  %229 = vst [vmem:[%s3 + $0x10] sm:$0xff] %v225
  %230 = vst [vmem:[%s3 + $0x18] sm:$0xff] %v226
  // Predicated region
  $region14: #{alexnet_forward.10} parent=0 // pred_check
    _
  $region15: #{alexnet_forward.10} parent=0 // pred_check_branch
    %232 = sbr.rel (0) target = $region17
  $region16: #{alexnet_forward.10} parent=0 // pred_region
    _
  $region17: #{alexnet_forward.10} parent=0 // pred_fallthru
    _
  // Predicated region
  $region18: #{alexnet_forward.10} parent=0 // pred_check
    _
  $region19: #{alexnet_forward.10} parent=0 // pred_check_branch
    %234 = sbr.rel (0) target = $region21
  $region20: #{alexnet_forward.10} parent=0 // pred_region
    _
  $region21: #{alexnet_forward.10} parent=0 // pred_fallthru
    _

// kernel: alexnet_forward.13
$region0: #{alexnet_forward.13}
  #allocation0 [shape = 'u32[]', space=smem, size = 0x4, offset = 0x4, fixed_abs, tag = 'smem constant byte address 0x4 - core index']
  #allocation1 [shape = 'u32[144,128]{1,0:T(1,128)}', space=vmem, size = 0x12000, scoped, tag = 'internal scratch']
  %s0 = inlined_call_operand.vmem [shape: bf16[8,128], index: 0, kind: input, shape index: {}]
  %s1 = inlined_call_operand.vmem [shape: bf16[128,128], index: 1, kind: input, shape index: {}]
  %s2 = inlined_call_operand.vmem [shape: f32[1,128], index: 2, kind: input, shape index: {}]
  %s3 = inlined_call_operand.vmem [shape: f32[8,128], index: 3, kind: output, shape index: {}]
  %s4 = sld [smem:[#allocation0]]
  $region22: #{alexnet_forward.13} parent=0
    _
  %s6 = ssub.s32 1, %s4
  %s7 = scalar_select 0, %s6, %s4
  // Predicated region
  $region2: #{alexnet_forward.13} parent=0 // pred_check
    _
  $region3: #{alexnet_forward.13} parent=0 // pred_check_branch
    %9 = sbr.rel (0) target = $region5
  $region4: #{alexnet_forward.13} parent=0 // pred_region
    _
  $region5: #{alexnet_forward.13} parent=0 // pred_fallthru
    _
  // Predicated region
  $region6: #{alexnet_forward.13} parent=0 // pred_check
    _
  $region7: #{alexnet_forward.13} parent=0 // pred_check_branch
    %11 = sbr.rel (0) target = $region9
  $region8: #{alexnet_forward.13} parent=0 // pred_region
    _
  $region9: #{alexnet_forward.13} parent=0 // pred_fallthru
    _
  // Predicated region
  $region10: #{alexnet_forward.13} parent=0 // pred_check
    _
  $region11: #{alexnet_forward.13} parent=0 // pred_check_branch
    %13 = sbr.rel (0) target = $region13
  $region12: #{alexnet_forward.13} parent=0 // pred_region
    _
  $region13: #{alexnet_forward.13} parent=0 // pred_fallthru
    _
  %v15 = vld [vmem:[%s0] sm:$0xf]
  %v16 = vld [vmem:[%s1] sm:$0xf]
  %v17 = vld [vmem:[%s1 + $0x4] sm:$0xf]
  %v18 = vld [vmem:[%s1 + $0x8] sm:$0xf]
  %v19 = vld [vmem:[%s1 + $0xc] sm:$0xf]
  %v20 = vld [vmem:[%s1 + $0x10] sm:$0xf]
  %v21 = vld [vmem:[%s1 + $0x14] sm:$0xf]
  %v22 = vld [vmem:[%s1 + $0x18] sm:$0xf]
  %v23 = vld [vmem:[%s1 + $0x1c] sm:$0xf]
  %v24 = vld [vmem:[%s1 + $0x20] sm:$0xf]
  %v25 = vld [vmem:[%s1 + $0x24] sm:$0xf]
  %v26 = vld [vmem:[%s1 + $0x28] sm:$0xf]
  %v27 = vld [vmem:[%s1 + $0x2c] sm:$0xf]
  %v28 = vld [vmem:[%s1 + $0x30] sm:$0xf]
  %v29 = vld [vmem:[%s1 + $0x34] sm:$0xf]
  %v30 = vld [vmem:[%s1 + $0x38] sm:$0xf]
  %v31 = vld [vmem:[%s1 + $0x3c] sm:$0xf]
  %v32 = vld [vmem:[%s2] sm:$0x1]
  %v34 = vlaneseq
  %v35 = vshrl.u32 %v34, 7
  %v36 = vsub.s32 0, %v35
  %v37 = vrot.slane %v32, %v36
  %v55 = vunpack.c.l.b16 %v16
  %v56 = vunpack.c.l.b16 %v17
  %v57 = vunpack.c.l.b16 %v18
  %v58 = vunpack.c.l.b16 %v19
  %v59 = vunpack.c.l.b16 %v20
  %v60 = vunpack.c.l.b16 %v21
  %v61 = vunpack.c.l.b16 %v22
  %v62 = vunpack.c.l.b16 %v23
  %v63 = vunpack.c.l.b16 %v24
  %v64 = vunpack.c.l.b16 %v25
  %v65 = vunpack.c.l.b16 %v26
  %v66 = vunpack.c.l.b16 %v27
  %v67 = vunpack.c.l.b16 %v28
  %v68 = vunpack.c.l.b16 %v29
  %v69 = vunpack.c.l.b16 %v30
  %v70 = vunpack.c.l.b16 %v31
  %v71 = vpack.c.b16 %v56, %v55
  %v72 = vpack.c.b16 %v58, %v57
  %v73 = vpack.c.b16 %v60, %v59
  %v74 = vpack.c.b16 %v62, %v61
  %v75 = vpack.c.b16 %v64, %v63
  %v76 = vpack.c.b16 %v66, %v65
  %v77 = vpack.c.b16 %v68, %v67
  %v78 = vpack.c.b16 %v70, %v69
  %87 = vmatprep.subr.bf16.mxu0 0
  %88 = vmatpush1.bf16.msra.mxu0 %v71
  %89 = vmatprep.subr.bf16.mxu0 0
  %90 = vmatpush1.bf16.msra.mxu0 %v72
  %91 = vmatprep.subr.bf16.mxu0 0
  %92 = vmatpush1.bf16.msra.mxu0 %v73
  %93 = vmatprep.subr.bf16.mxu0 0
  %94 = vmatpush1.bf16.msra.mxu0 %v74
  %95 = vmatprep.subr.bf16.mxu0 0
  %96 = vmatpush1.bf16.msra.mxu0 %v75
  %97 = vmatprep.subr.bf16.mxu0 0
  %98 = vmatpush1.bf16.msra.mxu0 %v76
  %99 = vmatprep.subr.bf16.mxu0 0
  %100 = vmatpush1.bf16.msra.mxu0 %v77
  %101 = vmatprep.subr.bf16.mxu0 0
  %102 = vmatpush1.bf16.msra.mxu0 %v78
  %103 = vmatprep.subr.bf16.mxu0 0
  %104 = vmatpush1.bf16.msra.mxu0 0
  %105 = vmatprep.subr.bf16.mxu0 0
  %106 = vmatpush1.bf16.msra.mxu0 0
  %107 = vmatprep.subr.bf16.mxu0 0
  %108 = vmatpush1.bf16.msra.mxu0 0
  %109 = vmatprep.subr.bf16.mxu0 0
  %110 = vmatpush1.bf16.msra.mxu0 0
  %111 = vmatprep.subr.bf16.mxu0 0
  %112 = vmatpush1.bf16.msra.mxu0 0
  %113 = vmatprep.subr.bf16.mxu0 0
  %114 = vmatpush1.bf16.msra.mxu0 0
  %115 = vmatprep.subr.bf16.mxu0 0
  %116 = vmatpush1.bf16.msra.mxu0 0
  %117 = vmatprep.subr.bf16.mxu0 0
  %118 = vmatpush1.bf16.msra.mxu0 0
  %119 = vmatprep.mubr.bf16.mxu0 0
  %120 = vmatmul.mubr.bf16.gmra.mrb[0].mxu0 %v15
  %v121 = vpop.f32.mrb[0].mxu0
  %v122 = vadd.f32 %v37, %v121
  %v123 = vpop.f32.mrb[0].mxu0
  %v124 = vpop.f32.mrb[0].mxu0
  %v125 = vpop.f32.mrb[0].mxu0
  %126 = vdwg.mxu0
  %v127 = vmax.f32 %v122, 0.0
  %128 = vst [vmem:[%s3] sm:$0xff] %v127
  // Predicated region
  $region14: #{alexnet_forward.13} parent=0 // pred_check
    _
  $region15: #{alexnet_forward.13} parent=0 // pred_check_branch
    %130 = sbr.rel (0) target = $region17
  $region16: #{alexnet_forward.13} parent=0 // pred_region
    _
  $region17: #{alexnet_forward.13} parent=0 // pred_fallthru
    _
  // Predicated region
  $region18: #{alexnet_forward.13} parent=0 // pred_check
    _
  $region19: #{alexnet_forward.13} parent=0 // pred_check_branch
    %132 = sbr.rel (0) target = $region21
  $region20: #{alexnet_forward.13} parent=0 // pred_region
    _
  $region21: #{alexnet_forward.13} parent=0 // pred_fallthru
    _

// kernel: alexnet_forward.15
$region0: #{alexnet_forward.15}
  #allocation0 [shape = 'u32[]', space=smem, size = 0x4, offset = 0x4, fixed_abs, tag = 'smem constant byte address 0x4 - core index']
  #allocation1 [shape = 'u32[144,128]{1,0:T(1,128)}', space=vmem, size = 0x12000, scoped, tag = 'internal scratch']
  %s0 = inlined_call_operand.vmem [shape: bf16[8,128], index: 0, kind: input, shape index: {}]
  %s1 = inlined_call_operand.vmem [shape: bf16[128,128], index: 1, kind: input, shape index: {}]
  %s2 = inlined_call_operand.vmem [shape: f32[1,128], index: 2, kind: input, shape index: {}]
  %s3 = inlined_call_operand.vmem [shape: f32[8,128], index: 3, kind: output, shape index: {}]
  %s4 = sld [smem:[#allocation0]]
  $region22: #{alexnet_forward.15} parent=0
    _
  %s6 = ssub.s32 1, %s4
  %s7 = scalar_select 0, %s6, %s4
  // Predicated region
  $region2: #{alexnet_forward.15} parent=0 // pred_check
    _
  $region3: #{alexnet_forward.15} parent=0 // pred_check_branch
    %9 = sbr.rel (0) target = $region5
  $region4: #{alexnet_forward.15} parent=0 // pred_region
    _
  $region5: #{alexnet_forward.15} parent=0 // pred_fallthru
    _
  // Predicated region
  $region6: #{alexnet_forward.15} parent=0 // pred_check
    _
  $region7: #{alexnet_forward.15} parent=0 // pred_check_branch
    %11 = sbr.rel (0) target = $region9
  $region8: #{alexnet_forward.15} parent=0 // pred_region
    _
  $region9: #{alexnet_forward.15} parent=0 // pred_fallthru
    _
  // Predicated region
  $region10: #{alexnet_forward.15} parent=0 // pred_check
    _
  $region11: #{alexnet_forward.15} parent=0 // pred_check_branch
    %13 = sbr.rel (0) target = $region13
  $region12: #{alexnet_forward.15} parent=0 // pred_region
    _
  $region13: #{alexnet_forward.15} parent=0 // pred_fallthru
    _
  %v15 = vld [vmem:[%s0] sm:$0xf]
  %v16 = vld [vmem:[%s1] sm:$0xf]
  %v17 = vld [vmem:[%s1 + $0x4] sm:$0xf]
  %v18 = vld [vmem:[%s1 + $0x8] sm:$0xf]
  %v19 = vld [vmem:[%s1 + $0xc] sm:$0xf]
  %v20 = vld [vmem:[%s1 + $0x10] sm:$0xf]
  %v21 = vld [vmem:[%s1 + $0x14] sm:$0xf]
  %v22 = vld [vmem:[%s1 + $0x18] sm:$0xf]
  %v23 = vld [vmem:[%s1 + $0x1c] sm:$0xf]
  %v24 = vld [vmem:[%s1 + $0x20] sm:$0xf]
  %v25 = vld [vmem:[%s1 + $0x24] sm:$0xf]
  %v26 = vld [vmem:[%s1 + $0x28] sm:$0xf]
  %v27 = vld [vmem:[%s1 + $0x2c] sm:$0xf]
  %v28 = vld [vmem:[%s1 + $0x30] sm:$0xf]
  %v29 = vld [vmem:[%s1 + $0x34] sm:$0xf]
  %v30 = vld [vmem:[%s1 + $0x38] sm:$0xf]
  %v31 = vld [vmem:[%s1 + $0x3c] sm:$0xf]
  %v32 = vld [vmem:[%s2] sm:$0x1]
  %v34 = vlaneseq
  %v35 = vshrl.u32 %v34, 7
  %v36 = vsub.s32 0, %v35
  %v37 = vrot.slane %v32, %v36
  %v55 = vunpack.c.l.b16 %v16
  %v56 = vunpack.c.l.b16 %v17
  %v57 = vunpack.c.l.b16 %v18
  %v58 = vunpack.c.l.b16 %v19
  %v59 = vunpack.c.l.b16 %v20
  %v60 = vunpack.c.l.b16 %v21
  %v61 = vunpack.c.l.b16 %v22
  %v62 = vunpack.c.l.b16 %v23
  %v63 = vunpack.c.l.b16 %v24
  %v64 = vunpack.c.l.b16 %v25
  %v65 = vunpack.c.l.b16 %v26
  %v66 = vunpack.c.l.b16 %v27
  %v67 = vunpack.c.l.b16 %v28
  %v68 = vunpack.c.l.b16 %v29
  %v69 = vunpack.c.l.b16 %v30
  %v70 = vunpack.c.l.b16 %v31
  %v71 = vpack.c.b16 %v56, %v55
  %v72 = vpack.c.b16 %v58, %v57
  %v73 = vpack.c.b16 %v60, %v59
  %v74 = vpack.c.b16 %v62, %v61
  %v75 = vpack.c.b16 %v64, %v63
  %v76 = vpack.c.b16 %v66, %v65
  %v77 = vpack.c.b16 %v68, %v67
  %v78 = vpack.c.b16 %v70, %v69
  %87 = vmatprep.subr.bf16.mxu0 0
  %88 = vmatpush1.bf16.msra.mxu0 %v71
  %89 = vmatprep.subr.bf16.mxu0 0
  %90 = vmatpush1.bf16.msra.mxu0 %v72
  %91 = vmatprep.subr.bf16.mxu0 0
  %92 = vmatpush1.bf16.msra.mxu0 %v73
  %93 = vmatprep.subr.bf16.mxu0 0
  %94 = vmatpush1.bf16.msra.mxu0 %v74
  %95 = vmatprep.subr.bf16.mxu0 0
  %96 = vmatpush1.bf16.msra.mxu0 %v75
  %97 = vmatprep.subr.bf16.mxu0 0
  %98 = vmatpush1.bf16.msra.mxu0 %v76
  %99 = vmatprep.subr.bf16.mxu0 0
  %100 = vmatpush1.bf16.msra.mxu0 %v77
  %101 = vmatprep.subr.bf16.mxu0 0
  %102 = vmatpush1.bf16.msra.mxu0 %v78
  %103 = vmatprep.subr.bf16.mxu0 0
  %104 = vmatpush1.bf16.msra.mxu0 0
  %105 = vmatprep.subr.bf16.mxu0 0
  %106 = vmatpush1.bf16.msra.mxu0 0
  %107 = vmatprep.subr.bf16.mxu0 0
  %108 = vmatpush1.bf16.msra.mxu0 0
  %109 = vmatprep.subr.bf16.mxu0 0
  %110 = vmatpush1.bf16.msra.mxu0 0
  %111 = vmatprep.subr.bf16.mxu0 0
  %112 = vmatpush1.bf16.msra.mxu0 0
  %113 = vmatprep.subr.bf16.mxu0 0
  %114 = vmatpush1.bf16.msra.mxu0 0
  %115 = vmatprep.subr.bf16.mxu0 0
  %116 = vmatpush1.bf16.msra.mxu0 0
  %117 = vmatprep.subr.bf16.mxu0 0
  %118 = vmatpush1.bf16.msra.mxu0 0
  %119 = vmatprep.mubr.bf16.mxu0 0
  %120 = vmatmul.mubr.bf16.gmra.mrb[0].mxu0 %v15
  %v121 = vpop.f32.mrb[0].mxu0
  %v122 = vadd.f32 %v37, %v121
  %v123 = vpop.f32.mrb[0].mxu0
  %v124 = vpop.f32.mrb[0].mxu0
  %v125 = vpop.f32.mrb[0].mxu0
  %126 = vdwg.mxu0
  %127 = vst [vmem:[%s3] sm:$0xff] %v122
  // Predicated region
  $region14: #{alexnet_forward.15} parent=0 // pred_check
    _
  $region15: #{alexnet_forward.15} parent=0 // pred_check_branch
    %129 = sbr.rel (0) target = $region17
  $region16: #{alexnet_forward.15} parent=0 // pred_region
    _
  $region17: #{alexnet_forward.15} parent=0 // pred_fallthru
    _
  // Predicated region
  $region18: #{alexnet_forward.15} parent=0 // pred_check
    _
  $region19: #{alexnet_forward.15} parent=0 // pred_check_branch
    %131 = sbr.rel (0) target = $region21
  $region20: #{alexnet_forward.15} parent=0 // pred_region
    _
  $region21: #{alexnet_forward.15} parent=0 // pred_fallthru
    _

</llo_original>
